<compile_context>
chip_gen: v6e
topology: v6e:2x2x1
jax: 0.10.0
libtpu: 0.0.40
codegen_flags: <defaults>
</compile_context>

<pallas_src>
import functools

import jax
import jax.numpy as jnp
from jax.experimental import pallas as pl
from jax.experimental.pallas import tpu as pltpu


def _reorg_kernel(x_ref, o_ref, *, stride: int, width: int):
    # x_ref: (C, th, s*W)     -- input viewed as (B, C, H//s, s*W)
    # o_ref: (s*s*C, th, W//s)
    s, W = stride, width
    C, th = x_ref.shape[0], x_ref.shape[1]
    W2 = W // s
    for i in range(s):                                   # static, unrolled
        # Original rows h = h2*s + i, selected by pure (contiguous) lane
        # addressing thanks to the (.., H//s, s*W) input view.
        rows = x_ref[:, :, i * W:(i + 1) * W]            # (C, th, W)
        # Lane de-interleave: w = w2*s + j.
        rows = rows.reshape(C, th, W2, s)                # (C, th, W2, s)
        for j in range(s):
            k = i * s + j
            o_ref[k * C:(k + 1) * C, :, :] = rows[:, :, :, j]


def _choose_row_tile(h2: int, bytes_per_row_block: int, budget: int = 2 << 20) -> int:
    """Output rows processed per grid step.

    Must divide h2 and be a multiple of 8 (sublane) unless it equals h2;
    kept near `budget` bytes so double-buffered in+out blocks stay well
    under scoped VMEM on every generation (incl. v7x's 64 MiB). Best effort.
    """
    if h2 % 8 != 0 or h2 * bytes_per_row_block <= budget:
        return h2
    best = 8
    for th in range(8, h2, 8):
        if h2 % th == 0 and th * bytes_per_row_block <= budget:
            best = th
    return best


def reorg(x: jax.Array, stride: int = 2) -> jax.Array:
    assert x.ndim == 4
    B, C, H, W = x.shape
    s = stride
    assert H % s == 0 and W % s == 0
    H2, W2 = H // s, W // s

    itemsize = jnp.dtype(x.dtype).itemsize
    th = _choose_row_tile(H2, C * s * W * itemsize)
    grid = (B, H2 // th)

    # Free (order-preserving) view: x_view[b, c, h2, i*W + w] = x[b, c, h2*s + i, w]
    x_view = x.reshape(B, C, H2, s * W)

    kernel = functools.partial(_reorg_kernel, stride=s, width=W)
    out_shape = jax.ShapeDtypeStruct((B, s * s * C, H2, W2), x.dtype)

    return pl.pallas_call(
        kernel,
        out_shape=out_shape,
        grid=grid,
        in_specs=[
            pl.BlockSpec((None, C, th, s * W), lambda b, h: (b, 0, h, 0)),
        ],
        out_specs=pl.BlockSpec((None, s * s * C, th, W2), lambda b, h: (b, 0, h, 0)),
        compiler_params=pltpu.CompilerParams(
            dimension_semantics=("parallel", "parallel"),
            vmem_limit_bytes=32 * 1024 * 1024,
        ),
        cost_estimate=pl.CostEstimate(
            flops=0,
            transcendentals=0,
            bytes_accessed=2 * x.size * itemsize,
        ),
    )(x_view)


def reorg_ref(x: jax.Array, stride: int = 2) -> jax.Array:
    # Pure-JAX reference mirroring the PyTorch view/transpose chain.
    B, C, H, W = x.shape
    s = stride
    y = x.reshape(B, C, H // s, s, W // s, s)        # (b, c, h2, i, w2, j)
    y = jnp.transpose(y, (0, 3, 5, 1, 2, 4))         # (b, i, j, c, h2, w2)
    return y.reshape(B, s * s * C, H // s, W // s)


if __name__ == "__main__":
    key = jax.random.PRNGKey(0)
    B, C, H, W = 2, 4, 16, 16
    x = jax.random.normal(key, (B, C, H, W), dtype=jnp.float32)

    out = jax.block_until_ready(reorg(x, stride=2))

    expected = reorg_ref(x, stride=2)
    assert out.shape == expected.shape, (out.shape, expected.shape)
    assert bool(jnp.array_equal(out, expected)), "mismatch vs reference"

    print("KERNEL_OK")
</pallas_src>

<mosaic_0001>
module attributes {stable_mosaic.version = 11 : i64} {
  func.func @_reorg_kernel(%arg0: i32, %arg1: i32, %arg2: memref<1x4x8x32xf32, #tpu.memory_space<vmem>>, %arg3: memref<1x16x8x8xf32, #tpu.memory_space<vmem>>) attributes {dimension_semantics = [#tpu.dimension_semantics<parallel>, #tpu.dimension_semantics<parallel>], iteration_bounds = array<i64: 2, 1>, scalar_prefetch = 0 : i64, scratch_operands = 0 : i64, tpu.core_type = #tpu.core_type<tc>, window_params = [{transform_indices = @transform_0, window_bounds = array<i64: 1, 4, 8, 32>}, {transform_indices = @transform_1, window_bounds = array<i64: 1, 16, 8, 8>}]} {
    %c0 = arith.constant 0 : index
    %c0_0 = arith.constant 0 : index
    %c0_1 = arith.constant 0 : index
    %c0_2 = arith.constant 0 : index
    %0 = vector.load %arg2[%c0, %c0_0, %c0_1, %c0_2] : memref<1x4x8x32xf32, #tpu.memory_space<vmem>>, vector<1x4x8x16xf32>
    %1 = vector.shape_cast %0 : vector<1x4x8x16xf32> to vector<4x8x16xf32>
    %2 = vector.shape_cast %1 : vector<4x8x16xf32> to vector<4x8x8x2xf32>
    %3 = vector.extract_strided_slice %2 {offsets = [0, 0, 0, 0], sizes = [4, 8, 8, 1], strides = [1, 1, 1, 1]} : vector<4x8x8x2xf32> to vector<4x8x8x1xf32>
    %4 = vector.shape_cast %3 : vector<4x8x8x1xf32> to vector<4x8x8xf32>
    %c0_3 = arith.constant 0 : index
    %c0_4 = arith.constant 0 : index
    %c0_5 = arith.constant 0 : index
    %c0_6 = arith.constant 0 : index
    %5 = vector.load %arg3[%c0_3, %c0_4, %c0_5, %c0_6] : memref<1x16x8x8xf32, #tpu.memory_space<vmem>>, vector<1x4x8x8xf32>
    %6 = vector.shape_cast %5 : vector<1x4x8x8xf32> to vector<4x8x8xf32>
    %7 = vector.shape_cast %4 : vector<4x8x8xf32> to vector<1x4x8x8xf32>
    tpu.vector_store %arg3[%c0_3, %c0_4, %c0_5, %c0_6], %7 {strides = array<i32>} : memref<1x16x8x8xf32, #tpu.memory_space<vmem>>, vector<1x4x8x8xf32>,
    %8 = vector.extract_strided_slice %2 {offsets = [0, 0, 0, 1], sizes = [4, 8, 8, 1], strides = [1, 1, 1, 1]} : vector<4x8x8x2xf32> to vector<4x8x8x1xf32>
    %9 = vector.shape_cast %8 : vector<4x8x8x1xf32> to vector<4x8x8xf32>
    %c0_7 = arith.constant 0 : index
    %c4 = arith.constant 4 : index
    %c0_8 = arith.constant 0 : index
    %c0_9 = arith.constant 0 : index
    %10 = vector.load %arg3[%c0_7, %c4, %c0_8, %c0_9] : memref<1x16x8x8xf32, #tpu.memory_space<vmem>>, vector<1x4x8x8xf32>
    %11 = vector.shape_cast %10 : vector<1x4x8x8xf32> to vector<4x8x8xf32>
    %12 = vector.shape_cast %9 : vector<4x8x8xf32> to vector<1x4x8x8xf32>
    tpu.vector_store %arg3[%c0_7, %c4, %c0_8, %c0_9], %12 {strides = array<i32>} : memref<1x16x8x8xf32, #tpu.memory_space<vmem>>, vector<1x4x8x8xf32>,
    %c0_10 = arith.constant 0 : index
    %c0_11 = arith.constant 0 : index
    %c0_12 = arith.constant 0 : index
    %c16 = arith.constant 16 : index
    %13 = vector.load %arg2[%c0_10, %c0_11, %c0_12, %c16] : memref<1x4x8x32xf32, #tpu.memory_space<vmem>>, vector<1x4x8x16xf32>
    %14 = vector.shape_cast %13 : vector<1x4x8x16xf32> to vector<4x8x16xf32>
    %15 = vector.shape_cast %14 : vector<4x8x16xf32> to vector<4x8x8x2xf32>
    %16 = vector.extract_strided_slice %15 {offsets = [0, 0, 0, 0], sizes = [4, 8, 8, 1], strides = [1, 1, 1, 1]} : vector<4x8x8x2xf32> to vector<4x8x8x1xf32>
    %17 = vector.shape_cast %16 : vector<4x8x8x1xf32> to vector<4x8x8xf32>
    %c0_13 = arith.constant 0 : index
    %c8 = arith.constant 8 : index
    %c0_14 = arith.constant 0 : index
    %c0_15 = arith.constant 0 : index
    %18 = vector.load %arg3[%c0_13, %c8, %c0_14, %c0_15] : memref<1x16x8x8xf32, #tpu.memory_space<vmem>>, vector<1x4x8x8xf32>
    %19 = vector.shape_cast %18 : vector<1x4x8x8xf32> to vector<4x8x8xf32>
    %20 = vector.shape_cast %17 : vector<4x8x8xf32> to vector<1x4x8x8xf32>
    tpu.vector_store %arg3[%c0_13, %c8, %c0_14, %c0_15], %20 {strides = array<i32>} : memref<1x16x8x8xf32, #tpu.memory_space<vmem>>, vector<1x4x8x8xf32>,
    %21 = vector.extract_strided_slice %15 {offsets = [0, 0, 0, 1], sizes = [4, 8, 8, 1], strides = [1, 1, 1, 1]} : vector<4x8x8x2xf32> to vector<4x8x8x1xf32>
    %22 = vector.shape_cast %21 : vector<4x8x8x1xf32> to vector<4x8x8xf32>
    %c0_16 = arith.constant 0 : index
    %c12 = arith.constant 12 : index
    %c0_17 = arith.constant 0 : index
    %c0_18 = arith.constant 0 : index
    %23 = vector.load %arg3[%c0_16, %c12, %c0_17, %c0_18] : memref<1x16x8x8xf32, #tpu.memory_space<vmem>>, vector<1x4x8x8xf32>
    %24 = vector.shape_cast %23 : vector<1x4x8x8xf32> to vector<4x8x8xf32>
    %25 = vector.shape_cast %22 : vector<4x8x8xf32> to vector<1x4x8x8xf32>
    tpu.vector_store %arg3[%c0_16, %c12, %c0_17, %c0_18], %25 {strides = array<i32>} : memref<1x16x8x8xf32, #tpu.memory_space<vmem>>, vector<1x4x8x8xf32>,
    return
  }
  func.func @transform_0(%arg0: i32, %arg1: i32) -> (i32, i32, i32, i32) {
    %c0_i32 = arith.constant 0 : i32
    %c0_i32_0 = arith.constant 0 : i32
    %c0_i32_1 = arith.constant 0 : i32
    return %arg0, %c0_i32, %arg1, %c0_i32_0 : i32, i32, i32, i32
  }
  func.func @transform_1(%arg0: i32, %arg1: i32) -> (i32, i32, i32, i32) {
    %c0_i32 = arith.constant 0 : i32
    %c0_i32_0 = arith.constant 0 : i32
    %c0_i32_1 = arith.constant 0 : i32
    return %arg0, %c0_i32, %arg1, %c0_i32_0 : i32, i32, i32, i32
  }
}

</mosaic_0001>

<llo_original>
// kernel: tpu_custom_call.1
$region0: #{tpu_custom_call.1}
  #allocation0 [shape = 'u32[]', space=smem, size = 0x4, offset = 0x4, fixed_abs, tag = 'smem constant byte address 0x4 - core index']
  #allocation1 [shape = 'u32[144,128]{1,0:T(1,128)}', space=vmem, size = 0x12000, scoped, tag = 'internal scratch']
  %s0 = inlined_call_operand.hbm [shape: f32[2,4,8,32], index: 0, kind: input, shape index: {}]
  %s1 = inlined_call_operand.vmem [shape: f32[2,16,8,8], index: 1, kind: output, shape index: {}]
  %s2 = sld [smem:[#allocation0]]
  $region41: #{tpu_custom_call.1} parent=0
    _
  %s4 = ssub.s32 1, %s2
  %s5 = scalar_select 0, %s4, %s2
  $region1: #{tpu_custom_call.1} parent=0
    #allocation2 [shape = 'u8[32768]{0}', space=vmem, size = 0x8000, scoped, tag = 'input window, operand 0']
    #allocation3 [shape = 's32[2]{0}', space=sflag, size = 0x8, scoped, tag = 'scoped memory for tpu_custom_call.1']
    %6 = vsyncpa [#allocation3], 0
    %s7 = scalar_lea.sflag [#allocation3], 1
    %8 = vsyncpa %s7, 0
    loop: start=0, step=1, limit=4
    $region2: #{tpu_custom_call.1} parent=1 // loop_pre_header
      _
    $region3: #{tpu_custom_call.1} parent=1 // loop_header
      %s10 = sphi 0, %s14
      %p11 = scmp.ge.s32.totalorder %s10, 4
      %s17 = sphi 0, %s29
      %s18 = sphi 0, %s25
      %s19 = sphi 0, %s17
      %s20 = sphi 0, %s18
      %s21 = sphi 0, %s19
      %s22 = sphi 0, %s20
      %s34 = sphi 0, %s36
      %s37 = sphi 0, %s34
      %s38 = sphi 0, %s37
      %s54 = sphi 0, %s38
      %s62 = sphi 0, %s64
      %s65 = sphi 0, %s62
      %s66 = sphi 0, %s65
      %s82 = sphi 0, %s66
    $region4: #{tpu_custom_call.1} parent=1 // loop_header_branch
      %13 = sbr.rel (%p11) target = $region8
    $region5: #{tpu_custom_call.1} parent=1 // loop_body
      %s15 = ssub.s32 %s10, 1
      %s16 = ssub.s32 %s10, 2
      %s23 = sadd.s32 1, %s18
      %p24 = scmp.ge.s32.totalorder %s23, 1
      %s25 = scalar_select %p24, 0, %s23
      %s26 = sadd.s32 1, %s17
      %s27 = scalar_select %p24, %s26, %s17
      %p28 = scmp.ge.s32.totalorder %s27, 2
      %s29 = scalar_select %p28, 0, %s27
      %s30 = ssub.s32 %s17, %s29
      %s31 = ssub.s32 %s18, %s25
      %s32 = sor.u32 %s30, %s31
      %p33 = scmp.eq.s32.totalorder %s32, 0
      %s35 = sadd.s32 %s34, 1
      %s36 = scalar_select %p33, %s34, %s35
      %p39 = pneg %p33
      %p40 = scmp.eq.s32.totalorder %s10, 1
      %p41 = por %p39, %p40
      %p42 = scmp.ne.s32.totalorder %s34, %s37
      %p43 = scmp.eq.s32.totalorder %s10, 0
      %p44 = por %p42, %p43
      %p45 = scmp.ne.s32.totalorder %s34, %s37
      %p46 = scmp.eq.s32.totalorder %s15, 1
      %p47 = por %p45, %p46
      %p48 = scmp.ne.s32.totalorder %s37, %s38
      %p49 = scmp.eq.s32.totalorder %s15, 0
      %p50 = por %p48, %p49
      %p51 = scmp.ne.s32.totalorder %s37, %s38
      %p52 = scmp.eq.s32.totalorder %s16, 1
      %p53 = por %p51, %p52
      %p55 = scmp.ne.s32.totalorder %s38, %s54
      %p56 = scmp.eq.s32.totalorder %s16, 0
      %p57 = por %p55, %p56
      %s58 = ssub.s32 %s17, %s29
      %s59 = ssub.s32 %s18, %s25
      %s60 = sor.u32 %s58, %s59
      %p61 = scmp.eq.s32.totalorder %s60, 0
      %s63 = sadd.s32 %s62, 1
      %s64 = scalar_select %p61, %s62, %s63
      %p67 = pneg %p61
      %p68 = scmp.eq.s32.totalorder %s10, 1
      %p69 = por %p67, %p68
      %p70 = scmp.ne.s32.totalorder %s62, %s65
      %p71 = scmp.eq.s32.totalorder %s10, 0
      %p72 = por %p70, %p71
      %p73 = scmp.ne.s32.totalorder %s62, %s65
      %p74 = scmp.eq.s32.totalorder %s15, 1
      %p75 = por %p73, %p74
      %p76 = scmp.ne.s32.totalorder %s65, %s66
      %p77 = scmp.eq.s32.totalorder %s15, 0
      %p78 = por %p76, %p77
      %p79 = scmp.ne.s32.totalorder %s65, %s66
      %p80 = scmp.eq.s32.totalorder %s16, 1
      %p81 = por %p79, %p80
      %p83 = scmp.ne.s32.totalorder %s66, %s82
      %p84 = scmp.eq.s32.totalorder %s16, 0
      %p85 = por %p83, %p84
      %p86 = scmp.le.s32.totalorder 1, %s10
      %p87 = scmp.lt.s32.totalorder %s10, 3
      %p88 = pnand %p86, %p87
      %p89 = pneg %p88
      // Predicated region
      $region9: #{tpu_custom_call.1} parent=5 // pred_check
        _
      $region10: #{tpu_custom_call.1} parent=5 // pred_check_branch
        %91 = sbr.rel (%p88) target = $region12
      $region11: #{tpu_custom_call.1} parent=5 // pred_region
        %s92 = ssub.s32 %s10, 1
      $region12: #{tpu_custom_call.1} parent=5 // pred_fallthru
        _
      %p93 = scmp.lt.s32.totalorder %s10, 2
      // Predicated region
      $region13: #{tpu_custom_call.1} parent=5 // pred_check
        %p94 = pneg %p93
      $region14: #{tpu_custom_call.1} parent=5 // pred_check_branch
        %96 = sbr.rel (%p94) target = $region16
      $region15: #{tpu_custom_call.1} parent=5 // pred_region
        // Predicated region
        $region17: #{tpu_custom_call.1} parent=15 // pred_check
          %p97 = pneg %p44
        $region18: #{tpu_custom_call.1} parent=15 // pred_check_branch
          %99 = sbr.rel (%p97) target = $region20
        $region19: #{tpu_custom_call.1} parent=15 // pred_region
          %s100 = sand.u32 %s34, 1
          %s101 = scalar_lea.sflag [#allocation3], %s100
          %s102 = sand.u32 %s34, 1
          %s103 = smul.addr %s102, 32
          %s104 = scalar_lea.vmem [#allocation2], %s103
          %s106 = ssub.s32 512, 512
          %107 = vsyncadd %s101, %s106
          %s108 = smul.addr %s17, 4
          %s109 = sadd.s32 %s18, %s108
          %s110 = smul.addr %s109, 128
          %s111 = scalar_lea.hbm %s0, %s110
          %s112 = sshll.u32 %s104, 4
          %s113 = int_to_ptr.vmem [resolvable:$true] %s112
          %118 = dma.hbm_to_vmem [thread:$0]  %s111, 512, %s113, %s101, 128, 128, 8
        $region20: #{tpu_custom_call.1} parent=15 // pred_fallthru
          _
      $region16: #{tpu_custom_call.1} parent=5 // pred_fallthru
        _
      %p119 = scmp.le.s32.totalorder 1, %s10
      %p120 = scmp.lt.s32.totalorder %s10, 3
      %p121 = pnand %p119, %p120
      %p122 = pneg %p121
      // Predicated region
      $region21: #{tpu_custom_call.1} parent=5 // pred_check
        _
      $region22: #{tpu_custom_call.1} parent=5 // pred_check_branch
        %124 = sbr.rel (%p121) target = $region24
      $region23: #{tpu_custom_call.1} parent=5 // pred_region
        %s125 = ssub.s32 %s10, 1
        %s126 = sand.u32 %s37, 1
        %s127 = scalar_lea.sflag [#allocation3], %s126
        %s128 = sand.u32 %s37, 1
        %s129 = smul.addr %s128, 32
        %s130 = scalar_lea.vmem [#allocation2], %s129
        // Predicated region
        $region25: #{tpu_custom_call.1} parent=23 // pred_check
          %p131 = pneg %p50
        $region26: #{tpu_custom_call.1} parent=23 // pred_check_branch
          %133 = sbr.rel (%p131) target = $region28
        $region27: #{tpu_custom_call.1} parent=23 // pred_region
          %134 = dma.done %s127, 512
        $region28: #{tpu_custom_call.1} parent=23 // pred_fallthru
          _
        %s135 = sand.u32 %s37, 1
        %s136 = scalar_lea.sflag [#allocation3], %s135
        %s137 = sand.u32 %s37, 1
        %s138 = smul.addr %s137, 32
        %s139 = scalar_lea.vmem [#allocation2], %s138
        %p140 = pneg %p50
        %p141 = pneg %p47
        %p142 = pneg %p78
        %p143 = pneg %p75
        %p144 = scmp.lt.s32.totalorder %s19, 1
        %s145 = scalar_select %p144, %s19, 1
        %p146 = scmp.lt.s32.totalorder %s20, 0
        %s147 = scalar_select %p146, %s20, 0
        %s148 = smul.addr %s145, 16
        %s149 = sadd.s32 %s147, %s148
        %s150 = smul.addr %s149, 8
        %s151 = scalar_lea.vmem %s1, %s150
        %p152 = scmp.lt.s32.totalorder %s19, 1
        %s153 = scalar_select %p152, %s19, 1
        %p154 = scmp.lt.s32.totalorder %s20, 0
        %s155 = scalar_select %p154, %s20, 0
        %s156 = smul.addr %s153, 16
        %s157 = sadd.s32 %s155, %s156
        %s158 = smul.addr %s157, 8
        %s159 = scalar_lea.vmem %s1, %s158
        %v160 = vld [vmem:[%s130] sm:$0xff]
        %v161 = vld [vmem:[%s130 + $0x8] sm:$0xff]
        %v162 = vld [vmem:[%s130 + $0x10] sm:$0xff]
        %v163 = vld [vmem:[%s130 + $0x18] sm:$0xff]
        %168 = vrot.lane.b32.xlu0 %v160, 126
        %v169 = vpop.permute.xlu0 %168
        %170 = vrot.lane.b32.xlu0 %v161, 126
        %v171 = vpop.permute.xlu0 %170
        %172 = vrot.lane.b32.xlu0 %v162, 126
        %v173 = vpop.permute.xlu0 %172
        %174 = vrot.lane.b32.xlu0 %v163, 126
        %v175 = vpop.permute.xlu0 %174
        %180 = vrot.lane.b32.xlu0 %v160, 124
        %v181 = vpop.permute.xlu0 %180
        %182 = vrot.lane.b32.xlu0 %v161, 124
        %v183 = vpop.permute.xlu0 %182
        %184 = vrot.lane.b32.xlu0 %v162, 124
        %v185 = vpop.permute.xlu0 %184
        %186 = vrot.lane.b32.xlu0 %v163, 124
        %v187 = vpop.permute.xlu0 %186
        %192 = vrot.lane.b32.xlu0 %v160, 122
        %v193 = vpop.permute.xlu0 %192
        %194 = vrot.lane.b32.xlu0 %v161, 122
        %v195 = vpop.permute.xlu0 %194
        %196 = vrot.lane.b32.xlu0 %v162, 122
        %v197 = vpop.permute.xlu0 %196
        %198 = vrot.lane.b32.xlu0 %v163, 122
        %v199 = vpop.permute.xlu0 %198
        %204 = vrot.lane.b32.xlu0 %v160, 120
        %v205 = vpop.permute.xlu0 %204
        %206 = vrot.lane.b32.xlu0 %v161, 120
        %v207 = vpop.permute.xlu0 %206
        %208 = vrot.lane.b32.xlu0 %v162, 120
        %v209 = vpop.permute.xlu0 %208
        %210 = vrot.lane.b32.xlu0 %v163, 120
        %v211 = vpop.permute.xlu0 %210
        %216 = vrot.lane.b32.xlu0 %v160, 118
        %v217 = vpop.permute.xlu0 %216
        %218 = vrot.lane.b32.xlu0 %v161, 118
        %v219 = vpop.permute.xlu0 %218
        %220 = vrot.lane.b32.xlu0 %v162, 118
        %v221 = vpop.permute.xlu0 %220
        %222 = vrot.lane.b32.xlu0 %v163, 118
        %v223 = vpop.permute.xlu0 %222
        %228 = vrot.lane.b32.xlu0 %v160, 116
        %v229 = vpop.permute.xlu0 %228
        %230 = vrot.lane.b32.xlu0 %v161, 116
        %v231 = vpop.permute.xlu0 %230
        %232 = vrot.lane.b32.xlu0 %v162, 116
        %v233 = vpop.permute.xlu0 %232
        %234 = vrot.lane.b32.xlu0 %v163, 116
        %v235 = vpop.permute.xlu0 %234
        %240 = vrot.lane.b32.xlu0 %v160, 114
        %v241 = vpop.permute.xlu0 %240
        %242 = vrot.lane.b32.xlu0 %v161, 114
        %v243 = vpop.permute.xlu0 %242
        %244 = vrot.lane.b32.xlu0 %v162, 114
        %v245 = vpop.permute.xlu0 %244
        %246 = vrot.lane.b32.xlu0 %v163, 114
        %v247 = vpop.permute.xlu0 %246
        %v252 = vcombine.low %v160, %v181
        %v253 = vcombine.high %v160, %v181
        %v255 = vunpack.c.l.s4 1983009808
        %v256 = vunpack.c.0.s8 %v255
        %v257 = vlaneseq
        %v258 = vshrl.u32 %v257, 7
        %v259 = vsub.s32 %v256, %v258
        %v260 = vrot.slane %v252, %v259
        %v262 = vunpack.c.l.s4 1983009808
        %v263 = vunpack.c.0.s8 %v262
        %v264 = vlaneseq
        %v265 = vshrl.u32 %v264, 7
        %v266 = vsub.s32 %v263, %v265
        %v267 = vrot.slane %v253, %v266
        %v268 = vcombine.low %v169, %v193
        %v269 = vcombine.high %v169, %v193
        %v271 = vunpack.c.l.s4 1983009808
        %v272 = vunpack.c.0.s8 %v271
        %v273 = vlaneseq
        %v274 = vshrl.u32 %v273, 7
        %v275 = vsub.s32 %v272, %v274
        %v276 = vrot.slane %v268, %v275
        %v278 = vunpack.c.l.s4 1983009808
        %v279 = vunpack.c.0.s8 %v278
        %v280 = vlaneseq
        %v281 = vshrl.u32 %v280, 7
        %v282 = vsub.s32 %v279, %v281
        %v283 = vrot.slane %v269, %v282
        %v284 = vcombine.low %v205, %v229
        %v285 = vcombine.high %v205, %v229
        %v287 = vunpack.c.l.s4 1983009808
        %v288 = vunpack.c.0.s8 %v287
        %v289 = vlaneseq
        %v290 = vshrl.u32 %v289, 7
        %v291 = vsub.s32 %v288, %v290
        %v292 = vrot.slane %v284, %v291
        %v294 = vunpack.c.l.s4 1983009808
        %v295 = vunpack.c.0.s8 %v294
        %v296 = vlaneseq
        %v297 = vshrl.u32 %v296, 7
        %v298 = vsub.s32 %v295, %v297
        %v299 = vrot.slane %v285, %v298
        %v300 = vcombine.low %v217, %v241
        %v301 = vcombine.high %v217, %v241
        %v303 = vunpack.c.l.s4 1983009808
        %v304 = vunpack.c.0.s8 %v303
        %v305 = vlaneseq
        %v306 = vshrl.u32 %v305, 7
        %v307 = vsub.s32 %v304, %v306
        %v308 = vrot.slane %v300, %v307
        %v310 = vunpack.c.l.s4 1983009808
        %v311 = vunpack.c.0.s8 %v310
        %v312 = vlaneseq
        %v313 = vshrl.u32 %v312, 7
        %v314 = vsub.s32 %v311, %v313
        %v315 = vrot.slane %v301, %v314
        %v316 = vcombine.low %v260, %v276
        %v317 = vcombine.high %v260, %v276
        %v319 = vunpack.c.l.s4 1934713408
        %v320 = vunpack.c.0.s8 %v319
        %v321 = vlaneseq
        %v322 = vshrl.u32 %v321, 7
        %v323 = vsub.s32 %v320, %v322
        %v324 = vrot.slane %v316, %v323
        %v326 = vunpack.c.l.s4 1934713408
        %v327 = vunpack.c.0.s8 %v326
        %v328 = vlaneseq
        %v329 = vshrl.u32 %v328, 7
        %v330 = vsub.s32 %v327, %v329
        %v331 = vrot.slane %v317, %v330
        %v332 = vcombine.low %v267, %v283
        %v333 = vcombine.high %v267, %v283
        %v335 = vunpack.c.l.s4 1934713408
        %v336 = vunpack.c.0.s8 %v335
        %v337 = vlaneseq
        %v338 = vshrl.u32 %v337, 7
        %v339 = vsub.s32 %v336, %v338
        %v340 = vrot.slane %v332, %v339
        %v342 = vunpack.c.l.s4 1934713408
        %v343 = vunpack.c.0.s8 %v342
        %v344 = vlaneseq
        %v345 = vshrl.u32 %v344, 7
        %v346 = vsub.s32 %v343, %v345
        %v347 = vrot.slane %v333, %v346
        %v348 = vcombine.low %v292, %v308
        %v349 = vcombine.high %v292, %v308
        %v351 = vunpack.c.l.s4 1934713408
        %v352 = vunpack.c.0.s8 %v351
        %v353 = vlaneseq
        %v354 = vshrl.u32 %v353, 7
        %v355 = vsub.s32 %v352, %v354
        %v356 = vrot.slane %v348, %v355
        %v358 = vunpack.c.l.s4 1934713408
        %v359 = vunpack.c.0.s8 %v358
        %v360 = vlaneseq
        %v361 = vshrl.u32 %v360, 7
        %v362 = vsub.s32 %v359, %v361
        %v363 = vrot.slane %v349, %v362
        %v364 = vcombine.low %v299, %v315
        %v365 = vcombine.high %v299, %v315
        %v367 = vunpack.c.l.s4 1934713408
        %v368 = vunpack.c.0.s8 %v367
        %v369 = vlaneseq
        %v370 = vshrl.u32 %v369, 7
        %v371 = vsub.s32 %v368, %v370
        %v372 = vrot.slane %v364, %v371
        %v374 = vunpack.c.l.s4 1934713408
        %v375 = vunpack.c.0.s8 %v374
        %v376 = vlaneseq
        %v377 = vshrl.u32 %v376, 7
        %v378 = vsub.s32 %v375, %v377
        %v379 = vrot.slane %v365, %v378
        %v380 = vcombine.low %v324, %v356
        %v381 = vcombine.high %v324, %v356
        %v382 = vcombine.low %v331, %v363
        %v383 = vcombine.high %v331, %v363
        %v384 = vcombine.low %v340, %v372
        %v385 = vcombine.high %v340, %v372
        %v386 = vcombine.low %v347, %v379
        %v387 = vcombine.high %v347, %v379
        %v388 = vcombine.low %v161, %v183
        %v389 = vcombine.high %v161, %v183
        %v391 = vunpack.c.l.s4 1983009808
        %v392 = vunpack.c.0.s8 %v391
        %v393 = vlaneseq
        %v394 = vshrl.u32 %v393, 7
        %v395 = vsub.s32 %v392, %v394
        %v396 = vrot.slane %v388, %v395
        %v398 = vunpack.c.l.s4 1983009808
        %v399 = vunpack.c.0.s8 %v398
        %v400 = vlaneseq
        %v401 = vshrl.u32 %v400, 7
        %v402 = vsub.s32 %v399, %v401
        %v403 = vrot.slane %v389, %v402
        %v404 = vcombine.low %v171, %v195
        %v405 = vcombine.high %v171, %v195
        %v407 = vunpack.c.l.s4 1983009808
        %v408 = vunpack.c.0.s8 %v407
        %v409 = vlaneseq
        %v410 = vshrl.u32 %v409, 7
        %v411 = vsub.s32 %v408, %v410
        %v412 = vrot.slane %v404, %v411
        %v414 = vunpack.c.l.s4 1983009808
        %v415 = vunpack.c.0.s8 %v414
        %v416 = vlaneseq
        %v417 = vshrl.u32 %v416, 7
        %v418 = vsub.s32 %v415, %v417
        %v419 = vrot.slane %v405, %v418
        %v420 = vcombine.low %v207, %v231
        %v421 = vcombine.high %v207, %v231
        %v423 = vunpack.c.l.s4 1983009808
        %v424 = vunpack.c.0.s8 %v423
        %v425 = vlaneseq
        %v426 = vshrl.u32 %v425, 7
        %v427 = vsub.s32 %v424, %v426
        %v428 = vrot.slane %v420, %v427
        %v430 = vunpack.c.l.s4 1983009808
        %v431 = vunpack.c.0.s8 %v430
        %v432 = vlaneseq
        %v433 = vshrl.u32 %v432, 7
        %v434 = vsub.s32 %v431, %v433
        %v435 = vrot.slane %v421, %v434
        %v436 = vcombine.low %v219, %v243
        %v437 = vcombine.high %v219, %v243
        %v439 = vunpack.c.l.s4 1983009808
        %v440 = vunpack.c.0.s8 %v439
        %v441 = vlaneseq
        %v442 = vshrl.u32 %v441, 7
        %v443 = vsub.s32 %v440, %v442
        %v444 = vrot.slane %v436, %v443
        %v446 = vunpack.c.l.s4 1983009808
        %v447 = vunpack.c.0.s8 %v446
        %v448 = vlaneseq
        %v449 = vshrl.u32 %v448, 7
        %v450 = vsub.s32 %v447, %v449
        %v451 = vrot.slane %v437, %v450
        %v452 = vcombine.low %v396, %v412
        %v453 = vcombine.high %v396, %v412
        %v455 = vunpack.c.l.s4 1934713408
        %v456 = vunpack.c.0.s8 %v455
        %v457 = vlaneseq
        %v458 = vshrl.u32 %v457, 7
        %v459 = vsub.s32 %v456, %v458
        %v460 = vrot.slane %v452, %v459
        %v462 = vunpack.c.l.s4 1934713408
        %v463 = vunpack.c.0.s8 %v462
        %v464 = vlaneseq
        %v465 = vshrl.u32 %v464, 7
        %v466 = vsub.s32 %v463, %v465
        %v467 = vrot.slane %v453, %v466
        %v468 = vcombine.low %v403, %v419
        %v469 = vcombine.high %v403, %v419
        %v471 = vunpack.c.l.s4 1934713408
        %v472 = vunpack.c.0.s8 %v471
        %v473 = vlaneseq
        %v474 = vshrl.u32 %v473, 7
        %v475 = vsub.s32 %v472, %v474
        %v476 = vrot.slane %v468, %v475
        %v478 = vunpack.c.l.s4 1934713408
        %v479 = vunpack.c.0.s8 %v478
        %v480 = vlaneseq
        %v481 = vshrl.u32 %v480, 7
        %v482 = vsub.s32 %v479, %v481
        %v483 = vrot.slane %v469, %v482
        %v484 = vcombine.low %v428, %v444
        %v485 = vcombine.high %v428, %v444
        %v487 = vunpack.c.l.s4 1934713408
        %v488 = vunpack.c.0.s8 %v487
        %v489 = vlaneseq
        %v490 = vshrl.u32 %v489, 7
        %v491 = vsub.s32 %v488, %v490
        %v492 = vrot.slane %v484, %v491
        %v494 = vunpack.c.l.s4 1934713408
        %v495 = vunpack.c.0.s8 %v494
        %v496 = vlaneseq
        %v497 = vshrl.u32 %v496, 7
        %v498 = vsub.s32 %v495, %v497
        %v499 = vrot.slane %v485, %v498
        %v500 = vcombine.low %v435, %v451
        %v501 = vcombine.high %v435, %v451
        %v503 = vunpack.c.l.s4 1934713408
        %v504 = vunpack.c.0.s8 %v503
        %v505 = vlaneseq
        %v506 = vshrl.u32 %v505, 7
        %v507 = vsub.s32 %v504, %v506
        %v508 = vrot.slane %v500, %v507
        %v510 = vunpack.c.l.s4 1934713408
        %v511 = vunpack.c.0.s8 %v510
        %v512 = vlaneseq
        %v513 = vshrl.u32 %v512, 7
        %v514 = vsub.s32 %v511, %v513
        %v515 = vrot.slane %v501, %v514
        %v516 = vcombine.low %v460, %v492
        %v517 = vcombine.high %v460, %v492
        %v518 = vcombine.low %v467, %v499
        %v519 = vcombine.high %v467, %v499
        %v520 = vcombine.low %v476, %v508
        %v521 = vcombine.high %v476, %v508
        %v522 = vcombine.low %v483, %v515
        %v523 = vcombine.high %v483, %v515
        %v524 = vcombine.low %v162, %v185
        %v525 = vcombine.high %v162, %v185
        %v527 = vunpack.c.l.s4 1983009808
        %v528 = vunpack.c.0.s8 %v527
        %v529 = vlaneseq
        %v530 = vshrl.u32 %v529, 7
        %v531 = vsub.s32 %v528, %v530
        %v532 = vrot.slane %v524, %v531
        %v534 = vunpack.c.l.s4 1983009808
        %v535 = vunpack.c.0.s8 %v534
        %v536 = vlaneseq
        %v537 = vshrl.u32 %v536, 7
        %v538 = vsub.s32 %v535, %v537
        %v539 = vrot.slane %v525, %v538
        %v540 = vcombine.low %v173, %v197
        %v541 = vcombine.high %v173, %v197
        %v543 = vunpack.c.l.s4 1983009808
        %v544 = vunpack.c.0.s8 %v543
        %v545 = vlaneseq
        %v546 = vshrl.u32 %v545, 7
        %v547 = vsub.s32 %v544, %v546
        %v548 = vrot.slane %v540, %v547
        %v550 = vunpack.c.l.s4 1983009808
        %v551 = vunpack.c.0.s8 %v550
        %v552 = vlaneseq
        %v553 = vshrl.u32 %v552, 7
        %v554 = vsub.s32 %v551, %v553
        %v555 = vrot.slane %v541, %v554
        %v556 = vcombine.low %v209, %v233
        %v557 = vcombine.high %v209, %v233
        %v559 = vunpack.c.l.s4 1983009808
        %v560 = vunpack.c.0.s8 %v559
        %v561 = vlaneseq
        %v562 = vshrl.u32 %v561, 7
        %v563 = vsub.s32 %v560, %v562
        %v564 = vrot.slane %v556, %v563
        %v566 = vunpack.c.l.s4 1983009808
        %v567 = vunpack.c.0.s8 %v566
        %v568 = vlaneseq
        %v569 = vshrl.u32 %v568, 7
        %v570 = vsub.s32 %v567, %v569
        %v571 = vrot.slane %v557, %v570
        %v572 = vcombine.low %v221, %v245
        %v573 = vcombine.high %v221, %v245
        %v575 = vunpack.c.l.s4 1983009808
        %v576 = vunpack.c.0.s8 %v575
        %v577 = vlaneseq
        %v578 = vshrl.u32 %v577, 7
        %v579 = vsub.s32 %v576, %v578
        %v580 = vrot.slane %v572, %v579
        %v582 = vunpack.c.l.s4 1983009808
        %v583 = vunpack.c.0.s8 %v582
        %v584 = vlaneseq
        %v585 = vshrl.u32 %v584, 7
        %v586 = vsub.s32 %v583, %v585
        %v587 = vrot.slane %v573, %v586
        %v588 = vcombine.low %v532, %v548
        %v589 = vcombine.high %v532, %v548
        %v591 = vunpack.c.l.s4 1934713408
        %v592 = vunpack.c.0.s8 %v591
        %v593 = vlaneseq
        %v594 = vshrl.u32 %v593, 7
        %v595 = vsub.s32 %v592, %v594
        %v596 = vrot.slane %v588, %v595
        %v598 = vunpack.c.l.s4 1934713408
        %v599 = vunpack.c.0.s8 %v598
        %v600 = vlaneseq
        %v601 = vshrl.u32 %v600, 7
        %v602 = vsub.s32 %v599, %v601
        %v603 = vrot.slane %v589, %v602
        %v604 = vcombine.low %v539, %v555
        %v605 = vcombine.high %v539, %v555
        %v607 = vunpack.c.l.s4 1934713408
        %v608 = vunpack.c.0.s8 %v607
        %v609 = vlaneseq
        %v610 = vshrl.u32 %v609, 7
        %v611 = vsub.s32 %v608, %v610
        %v612 = vrot.slane %v604, %v611
        %v614 = vunpack.c.l.s4 1934713408
        %v615 = vunpack.c.0.s8 %v614
        %v616 = vlaneseq
        %v617 = vshrl.u32 %v616, 7
        %v618 = vsub.s32 %v615, %v617
        %v619 = vrot.slane %v605, %v618
        %v620 = vcombine.low %v564, %v580
        %v621 = vcombine.high %v564, %v580
        %v623 = vunpack.c.l.s4 1934713408
        %v624 = vunpack.c.0.s8 %v623
        %v625 = vlaneseq
        %v626 = vshrl.u32 %v625, 7
        %v627 = vsub.s32 %v624, %v626
        %v628 = vrot.slane %v620, %v627
        %v630 = vunpack.c.l.s4 1934713408
        %v631 = vunpack.c.0.s8 %v630
        %v632 = vlaneseq
        %v633 = vshrl.u32 %v632, 7
        %v634 = vsub.s32 %v631, %v633
        %v635 = vrot.slane %v621, %v634
        %v636 = vcombine.low %v571, %v587
        %v637 = vcombine.high %v571, %v587
        %v639 = vunpack.c.l.s4 1934713408
        %v640 = vunpack.c.0.s8 %v639
        %v641 = vlaneseq
        %v642 = vshrl.u32 %v641, 7
        %v643 = vsub.s32 %v640, %v642
        %v644 = vrot.slane %v636, %v643
        %v646 = vunpack.c.l.s4 1934713408
        %v647 = vunpack.c.0.s8 %v646
        %v648 = vlaneseq
        %v649 = vshrl.u32 %v648, 7
        %v650 = vsub.s32 %v647, %v649
        %v651 = vrot.slane %v637, %v650
        %v652 = vcombine.low %v596, %v628
        %v653 = vcombine.high %v596, %v628
        %v654 = vcombine.low %v603, %v635
        %v655 = vcombine.high %v603, %v635
        %v656 = vcombine.low %v612, %v644
        %v657 = vcombine.high %v612, %v644
        %v658 = vcombine.low %v619, %v651
        %v659 = vcombine.high %v619, %v651
        %v660 = vcombine.low %v163, %v187
        %v661 = vcombine.high %v163, %v187
        %v663 = vunpack.c.l.s4 1983009808
        %v664 = vunpack.c.0.s8 %v663
        %v665 = vlaneseq
        %v666 = vshrl.u32 %v665, 7
        %v667 = vsub.s32 %v664, %v666
        %v668 = vrot.slane %v660, %v667
        %v670 = vunpack.c.l.s4 1983009808
        %v671 = vunpack.c.0.s8 %v670
        %v672 = vlaneseq
        %v673 = vshrl.u32 %v672, 7
        %v674 = vsub.s32 %v671, %v673
        %v675 = vrot.slane %v661, %v674
        %v676 = vcombine.low %v175, %v199
        %v677 = vcombine.high %v175, %v199
        %v679 = vunpack.c.l.s4 1983009808
        %v680 = vunpack.c.0.s8 %v679
        %v681 = vlaneseq
        %v682 = vshrl.u32 %v681, 7
        %v683 = vsub.s32 %v680, %v682
        %v684 = vrot.slane %v676, %v683
        %v686 = vunpack.c.l.s4 1983009808
        %v687 = vunpack.c.0.s8 %v686
        %v688 = vlaneseq
        %v689 = vshrl.u32 %v688, 7
        %v690 = vsub.s32 %v687, %v689
        %v691 = vrot.slane %v677, %v690
        %v692 = vcombine.low %v211, %v235
        %v693 = vcombine.high %v211, %v235
        %v695 = vunpack.c.l.s4 1983009808
        %v696 = vunpack.c.0.s8 %v695
        %v697 = vlaneseq
        %v698 = vshrl.u32 %v697, 7
        %v699 = vsub.s32 %v696, %v698
        %v700 = vrot.slane %v692, %v699
        %v702 = vunpack.c.l.s4 1983009808
        %v703 = vunpack.c.0.s8 %v702
        %v704 = vlaneseq
        %v705 = vshrl.u32 %v704, 7
        %v706 = vsub.s32 %v703, %v705
        %v707 = vrot.slane %v693, %v706
        %v708 = vcombine.low %v223, %v247
        %v709 = vcombine.high %v223, %v247
        %v711 = vunpack.c.l.s4 1983009808
        %v712 = vunpack.c.0.s8 %v711
        %v713 = vlaneseq
        %v714 = vshrl.u32 %v713, 7
        %v715 = vsub.s32 %v712, %v714
        %v716 = vrot.slane %v708, %v715
        %v718 = vunpack.c.l.s4 1983009808
        %v719 = vunpack.c.0.s8 %v718
        %v720 = vlaneseq
        %v721 = vshrl.u32 %v720, 7
        %v722 = vsub.s32 %v719, %v721
        %v723 = vrot.slane %v709, %v722
        %v724 = vcombine.low %v668, %v684
        %v725 = vcombine.high %v668, %v684
        %v727 = vunpack.c.l.s4 1934713408
        %v728 = vunpack.c.0.s8 %v727
        %v729 = vlaneseq
        %v730 = vshrl.u32 %v729, 7
        %v731 = vsub.s32 %v728, %v730
        %v732 = vrot.slane %v724, %v731
        %v734 = vunpack.c.l.s4 1934713408
        %v735 = vunpack.c.0.s8 %v734
        %v736 = vlaneseq
        %v737 = vshrl.u32 %v736, 7
        %v738 = vsub.s32 %v735, %v737
        %v739 = vrot.slane %v725, %v738
        %v740 = vcombine.low %v675, %v691
        %v741 = vcombine.high %v675, %v691
        %v743 = vunpack.c.l.s4 1934713408
        %v744 = vunpack.c.0.s8 %v743
        %v745 = vlaneseq
        %v746 = vshrl.u32 %v745, 7
        %v747 = vsub.s32 %v744, %v746
        %v748 = vrot.slane %v740, %v747
        %v750 = vunpack.c.l.s4 1934713408
        %v751 = vunpack.c.0.s8 %v750
        %v752 = vlaneseq
        %v753 = vshrl.u32 %v752, 7
        %v754 = vsub.s32 %v751, %v753
        %v755 = vrot.slane %v741, %v754
        %v756 = vcombine.low %v700, %v716
        %v757 = vcombine.high %v700, %v716
        %v759 = vunpack.c.l.s4 1934713408
        %v760 = vunpack.c.0.s8 %v759
        %v761 = vlaneseq
        %v762 = vshrl.u32 %v761, 7
        %v763 = vsub.s32 %v760, %v762
        %v764 = vrot.slane %v756, %v763
        %v766 = vunpack.c.l.s4 1934713408
        %v767 = vunpack.c.0.s8 %v766
        %v768 = vlaneseq
        %v769 = vshrl.u32 %v768, 7
        %v770 = vsub.s32 %v767, %v769
        %v771 = vrot.slane %v757, %v770
        %v772 = vcombine.low %v707, %v723
        %v773 = vcombine.high %v707, %v723
        %v775 = vunpack.c.l.s4 1934713408
        %v776 = vunpack.c.0.s8 %v775
        %v777 = vlaneseq
        %v778 = vshrl.u32 %v777, 7
        %v779 = vsub.s32 %v776, %v778
        %v780 = vrot.slane %v772, %v779
        %v782 = vunpack.c.l.s4 1934713408
        %v783 = vunpack.c.0.s8 %v782
        %v784 = vlaneseq
        %v785 = vshrl.u32 %v784, 7
        %v786 = vsub.s32 %v783, %v785
        %v787 = vrot.slane %v773, %v786
        %v788 = vcombine.low %v732, %v764
        %v789 = vcombine.high %v732, %v764
        %v790 = vcombine.low %v739, %v771
        %v791 = vcombine.high %v739, %v771
        %v792 = vcombine.low %v748, %v780
        %v793 = vcombine.high %v748, %v780
        %v794 = vcombine.low %v755, %v787
        %v795 = vcombine.high %v755, %v787
        %828 = vset.pattern.permute.xlu0 0
        %829 = vperm.xlu0 %828, %v380
        %v830 = vpop.permute.xlu0 %829
        %831 = vset.pattern.permute.xlu0 0
        %832 = vperm.xlu0 %831, %v381
        %v833 = vpop.permute.xlu0 %832
        %834 = vset.pattern.permute.xlu0 0
        %835 = vperm.xlu0 %834, %v382
        %v836 = vpop.permute.xlu0 %835
        %837 = vset.pattern.permute.xlu0 0
        %838 = vperm.xlu0 %837, %v383
        %v839 = vpop.permute.xlu0 %838
        %840 = vset.pattern.permute.xlu0 0
        %841 = vperm.xlu0 %840, %v384
        %v842 = vpop.permute.xlu0 %841
        %843 = vset.pattern.permute.xlu0 0
        %844 = vperm.xlu0 %843, %v385
        %v845 = vpop.permute.xlu0 %844
        %846 = vset.pattern.permute.xlu0 0
        %847 = vperm.xlu0 %846, %v386
        %v848 = vpop.permute.xlu0 %847
        %849 = vset.pattern.permute.xlu0 0
        %850 = vperm.xlu0 %849, %v387
        %v851 = vpop.permute.xlu0 %850
        %852 = vset.pattern.permute.xlu0 0
        %853 = vperm.xlu0 %852, %v516
        %v854 = vpop.permute.xlu0 %853
        %855 = vset.pattern.permute.xlu0 0
        %856 = vperm.xlu0 %855, %v517
        %v857 = vpop.permute.xlu0 %856
        %858 = vset.pattern.permute.xlu0 0
        %859 = vperm.xlu0 %858, %v518
        %v860 = vpop.permute.xlu0 %859
        %861 = vset.pattern.permute.xlu0 0
        %862 = vperm.xlu0 %861, %v519
        %v863 = vpop.permute.xlu0 %862
        %864 = vset.pattern.permute.xlu0 0
        %865 = vperm.xlu0 %864, %v520
        %v866 = vpop.permute.xlu0 %865
        %867 = vset.pattern.permute.xlu0 0
        %868 = vperm.xlu0 %867, %v521
        %v869 = vpop.permute.xlu0 %868
        %870 = vset.pattern.permute.xlu0 0
        %871 = vperm.xlu0 %870, %v522
        %v872 = vpop.permute.xlu0 %871
        %873 = vset.pattern.permute.xlu0 0
        %874 = vperm.xlu0 %873, %v523
        %v875 = vpop.permute.xlu0 %874
        %876 = vset.pattern.permute.xlu0 0
        %877 = vperm.xlu0 %876, %v652
        %v878 = vpop.permute.xlu0 %877
        %879 = vset.pattern.permute.xlu0 0
        %880 = vperm.xlu0 %879, %v653
        %v881 = vpop.permute.xlu0 %880
        %882 = vset.pattern.permute.xlu0 0
        %883 = vperm.xlu0 %882, %v654
        %v884 = vpop.permute.xlu0 %883
        %885 = vset.pattern.permute.xlu0 0
        %886 = vperm.xlu0 %885, %v655
        %v887 = vpop.permute.xlu0 %886
        %888 = vset.pattern.permute.xlu0 0
        %889 = vperm.xlu0 %888, %v656
        %v890 = vpop.permute.xlu0 %889
        %891 = vset.pattern.permute.xlu0 0
        %892 = vperm.xlu0 %891, %v657
        %v893 = vpop.permute.xlu0 %892
        %894 = vset.pattern.permute.xlu0 0
        %895 = vperm.xlu0 %894, %v658
        %v896 = vpop.permute.xlu0 %895
        %897 = vset.pattern.permute.xlu0 0
        %898 = vperm.xlu0 %897, %v659
        %v899 = vpop.permute.xlu0 %898
        %900 = vset.pattern.permute.xlu0 0
        %901 = vperm.xlu0 %900, %v788
        %v902 = vpop.permute.xlu0 %901
        %903 = vset.pattern.permute.xlu0 0
        %904 = vperm.xlu0 %903, %v789
        %v905 = vpop.permute.xlu0 %904
        %906 = vset.pattern.permute.xlu0 0
        %907 = vperm.xlu0 %906, %v790
        %v908 = vpop.permute.xlu0 %907
        %909 = vset.pattern.permute.xlu0 0
        %910 = vperm.xlu0 %909, %v791
        %v911 = vpop.permute.xlu0 %910
        %912 = vset.pattern.permute.xlu0 0
        %913 = vperm.xlu0 %912, %v792
        %v914 = vpop.permute.xlu0 %913
        %915 = vset.pattern.permute.xlu0 0
        %916 = vperm.xlu0 %915, %v793
        %v917 = vpop.permute.xlu0 %916
        %918 = vset.pattern.permute.xlu0 0
        %919 = vperm.xlu0 %918, %v794
        %v920 = vpop.permute.xlu0 %919
        %921 = vset.pattern.permute.xlu0 0
        %922 = vperm.xlu0 %921, %v795
        %v923 = vpop.permute.xlu0 %922
        %v924 = vlaneseq
        %v925 = vand.u32 %v924, 127
        %v926 = vlaneseq
        %v927 = vshrl.u32 %v926, 7
        %v928 = vsub.s32 %v925, %v927
        %v929 = vrot.slane %v830, %v928
        %v930 = vlaneseq
        %v931 = vshrl.u32 %v930, 7
        %v932 = vsub.s32 %v925, %v931
        %v933 = vrot.slane %v833, %v932
        %v934 = vlaneseq
        %v935 = vshrl.u32 %v934, 7
        %v936 = vsub.s32 %v925, %v935
        %v937 = vrot.slane %v836, %v936
        %v938 = vlaneseq
        %v939 = vshrl.u32 %v938, 7
        %v940 = vsub.s32 %v925, %v939
        %v941 = vrot.slane %v839, %v940
        %v942 = vlaneseq
        %v943 = vshrl.u32 %v942, 7
        %v944 = vsub.s32 %v925, %v943
        %v945 = vrot.slane %v842, %v944
        %v946 = vlaneseq
        %v947 = vshrl.u32 %v946, 7
        %v948 = vsub.s32 %v925, %v947
        %v949 = vrot.slane %v845, %v948
        %v950 = vlaneseq
        %v951 = vshrl.u32 %v950, 7
        %v952 = vsub.s32 %v925, %v951
        %v953 = vrot.slane %v848, %v952
        %v954 = vlaneseq
        %v955 = vshrl.u32 %v954, 7
        %v956 = vsub.s32 %v925, %v955
        %v957 = vrot.slane %v851, %v956
        %v958 = vlaneseq
        %v959 = vshrl.u32 %v958, 7
        %v960 = vsub.s32 %v925, %v959
        %v961 = vrot.slane %v854, %v960
        %v962 = vlaneseq
        %v963 = vshrl.u32 %v962, 7
        %v964 = vsub.s32 %v925, %v963
        %v965 = vrot.slane %v857, %v964
        %v966 = vlaneseq
        %v967 = vshrl.u32 %v966, 7
        %v968 = vsub.s32 %v925, %v967
        %v969 = vrot.slane %v860, %v968
        %v970 = vlaneseq
        %v971 = vshrl.u32 %v970, 7
        %v972 = vsub.s32 %v925, %v971
        %v973 = vrot.slane %v863, %v972
        %v974 = vlaneseq
        %v975 = vshrl.u32 %v974, 7
        %v976 = vsub.s32 %v925, %v975
        %v977 = vrot.slane %v866, %v976
        %v978 = vlaneseq
        %v979 = vshrl.u32 %v978, 7
        %v980 = vsub.s32 %v925, %v979
        %v981 = vrot.slane %v869, %v980
        %v982 = vlaneseq
        %v983 = vshrl.u32 %v982, 7
        %v984 = vsub.s32 %v925, %v983
        %v985 = vrot.slane %v872, %v984
        %v986 = vlaneseq
        %v987 = vshrl.u32 %v986, 7
        %v988 = vsub.s32 %v925, %v987
        %v989 = vrot.slane %v875, %v988
        %v990 = vlaneseq
        %v991 = vshrl.u32 %v990, 7
        %v992 = vsub.s32 %v925, %v991
        %v993 = vrot.slane %v878, %v992
        %v994 = vlaneseq
        %v995 = vshrl.u32 %v994, 7
        %v996 = vsub.s32 %v925, %v995
        %v997 = vrot.slane %v881, %v996
        %v998 = vlaneseq
        %v999 = vshrl.u32 %v998, 7
        %v1000 = vsub.s32 %v925, %v999
        %v1001 = vrot.slane %v884, %v1000
        %v1002 = vlaneseq
        %v1003 = vshrl.u32 %v1002, 7
        %v1004 = vsub.s32 %v925, %v1003
        %v1005 = vrot.slane %v887, %v1004
        %v1006 = vlaneseq
        %v1007 = vshrl.u32 %v1006, 7
        %v1008 = vsub.s32 %v925, %v1007
        %v1009 = vrot.slane %v890, %v1008
        %v1010 = vlaneseq
        %v1011 = vshrl.u32 %v1010, 7
        %v1012 = vsub.s32 %v925, %v1011
        %v1013 = vrot.slane %v893, %v1012
        %v1014 = vlaneseq
        %v1015 = vshrl.u32 %v1014, 7
        %v1016 = vsub.s32 %v925, %v1015
        %v1017 = vrot.slane %v896, %v1016
        %v1018 = vlaneseq
        %v1019 = vshrl.u32 %v1018, 7
        %v1020 = vsub.s32 %v925, %v1019
        %v1021 = vrot.slane %v899, %v1020
        %v1022 = vlaneseq
        %v1023 = vshrl.u32 %v1022, 7
        %v1024 = vsub.s32 %v925, %v1023
        %v1025 = vrot.slane %v902, %v1024
        %v1026 = vlaneseq
        %v1027 = vshrl.u32 %v1026, 7
        %v1028 = vsub.s32 %v925, %v1027
        %v1029 = vrot.slane %v905, %v1028
        %v1030 = vlaneseq
        %v1031 = vshrl.u32 %v1030, 7
        %v1032 = vsub.s32 %v925, %v1031
        %v1033 = vrot.slane %v908, %v1032
        %v1034 = vlaneseq
        %v1035 = vshrl.u32 %v1034, 7
        %v1036 = vsub.s32 %v925, %v1035
        %v1037 = vrot.slane %v911, %v1036
        %v1038 = vlaneseq
        %v1039 = vshrl.u32 %v1038, 7
        %v1040 = vsub.s32 %v925, %v1039
        %v1041 = vrot.slane %v914, %v1040
        %v1042 = vlaneseq
        %v1043 = vshrl.u32 %v1042, 7
        %v1044 = vsub.s32 %v925, %v1043
        %v1045 = vrot.slane %v917, %v1044
        %v1046 = vlaneseq
        %v1047 = vshrl.u32 %v1046, 7
        %v1048 = vsub.s32 %v925, %v1047
        %v1049 = vrot.slane %v920, %v1048
        %v1050 = vlaneseq
        %v1051 = vshrl.u32 %v1050, 7
        %v1052 = vsub.s32 %v925, %v1051
        %v1053 = vrot.slane %v923, %v1052
        %vm1054 = vcmask 1041409
        %v1055 = vsel %vm1054, %v933, %v929
        %vm1056 = vcmask 1042434
        %v1057 = vsel %vm1056, %v937, %v1055
        %vm1058 = vcmask 1043459
        %v1059 = vsel %vm1058, %v941, %v1057
        %vm1060 = vcmask 1044484
        %v1061 = vsel %vm1060, %v945, %v1059
        %vm1062 = vcmask 1045509
        %v1063 = vsel %vm1062, %v949, %v1061
        %vm1064 = vcmask 1046534
        %v1065 = vsel %vm1064, %v953, %v1063
        %vm1066 = vcmask 1047559
        %v1067 = vsel %vm1066, %v957, %v1065
        %v1068 = vsel %vm1054, %v965, %v961
        %v1069 = vsel %vm1056, %v969, %v1068
        %v1070 = vsel %vm1058, %v973, %v1069
        %v1071 = vsel %vm1060, %v977, %v1070
        %v1072 = vsel %vm1062, %v981, %v1071
        %v1073 = vsel %vm1064, %v985, %v1072
        %v1074 = vsel %vm1066, %v989, %v1073
        %v1075 = vsel %vm1054, %v997, %v993
        %v1076 = vsel %vm1056, %v1001, %v1075
        %v1077 = vsel %vm1058, %v1005, %v1076
        %v1078 = vsel %vm1060, %v1009, %v1077
        %v1079 = vsel %vm1062, %v1013, %v1078
        %v1080 = vsel %vm1064, %v1017, %v1079
        %v1081 = vsel %vm1066, %v1021, %v1080
        %v1082 = vsel %vm1054, %v1029, %v1025
        %v1083 = vsel %vm1056, %v1033, %v1082
        %v1084 = vsel %vm1058, %v1037, %v1083
        %v1085 = vsel %vm1060, %v1041, %v1084
        %v1086 = vsel %vm1062, %v1045, %v1085
        %v1087 = vsel %vm1064, %v1049, %v1086
        %v1088 = vsel %vm1066, %v1053, %v1087
        %vm1093 = vcmask 64512
        %1094 = vst.msk [vmem:[%s159] sm:$0xff] %vm1093, %v1067
        %1095 = vst.msk [vmem:[%s159 + $0x8] sm:$0xff] %vm1093, %v1074
        %1096 = vst.msk [vmem:[%s159 + $0x10] sm:$0xff] %vm1093, %v1081
        %1097 = vst.msk [vmem:[%s159 + $0x18] sm:$0xff] %vm1093, %v1088
        %1098 = vset.pattern.permute.xlu0 1
        %1099 = vperm.xlu0 %1098, %v380
        %v1100 = vpop.permute.xlu0 %1099
        %1101 = vset.pattern.permute.xlu0 1
        %1102 = vperm.xlu0 %1101, %v381
        %v1103 = vpop.permute.xlu0 %1102
        %1104 = vset.pattern.permute.xlu0 1
        %1105 = vperm.xlu0 %1104, %v382
        %v1106 = vpop.permute.xlu0 %1105
        %1107 = vset.pattern.permute.xlu0 1
        %1108 = vperm.xlu0 %1107, %v383
        %v1109 = vpop.permute.xlu0 %1108
        %1110 = vset.pattern.permute.xlu0 1
        %1111 = vperm.xlu0 %1110, %v384
        %v1112 = vpop.permute.xlu0 %1111
        %1113 = vset.pattern.permute.xlu0 1
        %1114 = vperm.xlu0 %1113, %v385
        %v1115 = vpop.permute.xlu0 %1114
        %1116 = vset.pattern.permute.xlu0 1
        %1117 = vperm.xlu0 %1116, %v386
        %v1118 = vpop.permute.xlu0 %1117
        %1119 = vset.pattern.permute.xlu0 1
        %1120 = vperm.xlu0 %1119, %v387
        %v1121 = vpop.permute.xlu0 %1120
        %1122 = vset.pattern.permute.xlu0 1
        %1123 = vperm.xlu0 %1122, %v516
        %v1124 = vpop.permute.xlu0 %1123
        %1125 = vset.pattern.permute.xlu0 1
        %1126 = vperm.xlu0 %1125, %v517
        %v1127 = vpop.permute.xlu0 %1126
        %1128 = vset.pattern.permute.xlu0 1
        %1129 = vperm.xlu0 %1128, %v518
        %v1130 = vpop.permute.xlu0 %1129
        %1131 = vset.pattern.permute.xlu0 1
        %1132 = vperm.xlu0 %1131, %v519
        %v1133 = vpop.permute.xlu0 %1132
        %1134 = vset.pattern.permute.xlu0 1
        %1135 = vperm.xlu0 %1134, %v520
        %v1136 = vpop.permute.xlu0 %1135
        %1137 = vset.pattern.permute.xlu0 1
        %1138 = vperm.xlu0 %1137, %v521
        %v1139 = vpop.permute.xlu0 %1138
        %1140 = vset.pattern.permute.xlu0 1
        %1141 = vperm.xlu0 %1140, %v522
        %v1142 = vpop.permute.xlu0 %1141
        %1143 = vset.pattern.permute.xlu0 1
        %1144 = vperm.xlu0 %1143, %v523
        %v1145 = vpop.permute.xlu0 %1144
        %1146 = vset.pattern.permute.xlu0 1
        %1147 = vperm.xlu0 %1146, %v652
        %v1148 = vpop.permute.xlu0 %1147
        %1149 = vset.pattern.permute.xlu0 1
        %1150 = vperm.xlu0 %1149, %v653
        %v1151 = vpop.permute.xlu0 %1150
        %1152 = vset.pattern.permute.xlu0 1
        %1153 = vperm.xlu0 %1152, %v654
        %v1154 = vpop.permute.xlu0 %1153
        %1155 = vset.pattern.permute.xlu0 1
        %1156 = vperm.xlu0 %1155, %v655
        %v1157 = vpop.permute.xlu0 %1156
        %1158 = vset.pattern.permute.xlu0 1
        %1159 = vperm.xlu0 %1158, %v656
        %v1160 = vpop.permute.xlu0 %1159
        %1161 = vset.pattern.permute.xlu0 1
        %1162 = vperm.xlu0 %1161, %v657
        %v1163 = vpop.permute.xlu0 %1162
        %1164 = vset.pattern.permute.xlu0 1
        %1165 = vperm.xlu0 %1164, %v658
        %v1166 = vpop.permute.xlu0 %1165
        %1167 = vset.pattern.permute.xlu0 1
        %1168 = vperm.xlu0 %1167, %v659
        %v1169 = vpop.permute.xlu0 %1168
        %1170 = vset.pattern.permute.xlu0 1
        %1171 = vperm.xlu0 %1170, %v788
        %v1172 = vpop.permute.xlu0 %1171
        %1173 = vset.pattern.permute.xlu0 1
        %1174 = vperm.xlu0 %1173, %v789
        %v1175 = vpop.permute.xlu0 %1174
        %1176 = vset.pattern.permute.xlu0 1
        %1177 = vperm.xlu0 %1176, %v790
        %v1178 = vpop.permute.xlu0 %1177
        %1179 = vset.pattern.permute.xlu0 1
        %1180 = vperm.xlu0 %1179, %v791
        %v1181 = vpop.permute.xlu0 %1180
        %1182 = vset.pattern.permute.xlu0 1
        %1183 = vperm.xlu0 %1182, %v792
        %v1184 = vpop.permute.xlu0 %1183
        %1185 = vset.pattern.permute.xlu0 1
        %1186 = vperm.xlu0 %1185, %v793
        %v1187 = vpop.permute.xlu0 %1186
        %1188 = vset.pattern.permute.xlu0 1
        %1189 = vperm.xlu0 %1188, %v794
        %v1190 = vpop.permute.xlu0 %1189
        %1191 = vset.pattern.permute.xlu0 1
        %1192 = vperm.xlu0 %1191, %v795
        %v1193 = vpop.permute.xlu0 %1192
        %v1194 = vlaneseq
        %v1195 = vshrl.u32 %v1194, 7
        %v1196 = vsub.s32 %v925, %v1195
        %v1197 = vrot.slane %v1100, %v1196
        %v1198 = vlaneseq
        %v1199 = vshrl.u32 %v1198, 7
        %v1200 = vsub.s32 %v925, %v1199
        %v1201 = vrot.slane %v1103, %v1200
        %v1202 = vlaneseq
        %v1203 = vshrl.u32 %v1202, 7
        %v1204 = vsub.s32 %v925, %v1203
        %v1205 = vrot.slane %v1106, %v1204
        %v1206 = vlaneseq
        %v1207 = vshrl.u32 %v1206, 7
        %v1208 = vsub.s32 %v925, %v1207
        %v1209 = vrot.slane %v1109, %v1208
        %v1210 = vlaneseq
        %v1211 = vshrl.u32 %v1210, 7
        %v1212 = vsub.s32 %v925, %v1211
        %v1213 = vrot.slane %v1112, %v1212
        %v1214 = vlaneseq
        %v1215 = vshrl.u32 %v1214, 7
        %v1216 = vsub.s32 %v925, %v1215
        %v1217 = vrot.slane %v1115, %v1216
        %v1218 = vlaneseq
        %v1219 = vshrl.u32 %v1218, 7
        %v1220 = vsub.s32 %v925, %v1219
        %v1221 = vrot.slane %v1118, %v1220
        %v1222 = vlaneseq
        %v1223 = vshrl.u32 %v1222, 7
        %v1224 = vsub.s32 %v925, %v1223
        %v1225 = vrot.slane %v1121, %v1224
        %v1226 = vlaneseq
        %v1227 = vshrl.u32 %v1226, 7
        %v1228 = vsub.s32 %v925, %v1227
        %v1229 = vrot.slane %v1124, %v1228
        %v1230 = vlaneseq
        %v1231 = vshrl.u32 %v1230, 7
        %v1232 = vsub.s32 %v925, %v1231
        %v1233 = vrot.slane %v1127, %v1232
        %v1234 = vlaneseq
        %v1235 = vshrl.u32 %v1234, 7
        %v1236 = vsub.s32 %v925, %v1235
        %v1237 = vrot.slane %v1130, %v1236
        %v1238 = vlaneseq
        %v1239 = vshrl.u32 %v1238, 7
        %v1240 = vsub.s32 %v925, %v1239
        %v1241 = vrot.slane %v1133, %v1240
        %v1242 = vlaneseq
        %v1243 = vshrl.u32 %v1242, 7
        %v1244 = vsub.s32 %v925, %v1243
        %v1245 = vrot.slane %v1136, %v1244
        %v1246 = vlaneseq
        %v1247 = vshrl.u32 %v1246, 7
        %v1248 = vsub.s32 %v925, %v1247
        %v1249 = vrot.slane %v1139, %v1248
        %v1250 = vlaneseq
        %v1251 = vshrl.u32 %v1250, 7
        %v1252 = vsub.s32 %v925, %v1251
        %v1253 = vrot.slane %v1142, %v1252
        %v1254 = vlaneseq
        %v1255 = vshrl.u32 %v1254, 7
        %v1256 = vsub.s32 %v925, %v1255
        %v1257 = vrot.slane %v1145, %v1256
        %v1258 = vlaneseq
        %v1259 = vshrl.u32 %v1258, 7
        %v1260 = vsub.s32 %v925, %v1259
        %v1261 = vrot.slane %v1148, %v1260
        %v1262 = vlaneseq
        %v1263 = vshrl.u32 %v1262, 7
        %v1264 = vsub.s32 %v925, %v1263
        %v1265 = vrot.slane %v1151, %v1264
        %v1266 = vlaneseq
        %v1267 = vshrl.u32 %v1266, 7
        %v1268 = vsub.s32 %v925, %v1267
        %v1269 = vrot.slane %v1154, %v1268
        %v1270 = vlaneseq
        %v1271 = vshrl.u32 %v1270, 7
        %v1272 = vsub.s32 %v925, %v1271
        %v1273 = vrot.slane %v1157, %v1272
        %v1274 = vlaneseq
        %v1275 = vshrl.u32 %v1274, 7
        %v1276 = vsub.s32 %v925, %v1275
        %v1277 = vrot.slane %v1160, %v1276
        %v1278 = vlaneseq
        %v1279 = vshrl.u32 %v1278, 7
        %v1280 = vsub.s32 %v925, %v1279
        %v1281 = vrot.slane %v1163, %v1280
        %v1282 = vlaneseq
        %v1283 = vshrl.u32 %v1282, 7
        %v1284 = vsub.s32 %v925, %v1283
        %v1285 = vrot.slane %v1166, %v1284
        %v1286 = vlaneseq
        %v1287 = vshrl.u32 %v1286, 7
        %v1288 = vsub.s32 %v925, %v1287
        %v1289 = vrot.slane %v1169, %v1288
        %v1290 = vlaneseq
        %v1291 = vshrl.u32 %v1290, 7
        %v1292 = vsub.s32 %v925, %v1291
        %v1293 = vrot.slane %v1172, %v1292
        %v1294 = vlaneseq
        %v1295 = vshrl.u32 %v1294, 7
        %v1296 = vsub.s32 %v925, %v1295
        %v1297 = vrot.slane %v1175, %v1296
        %v1298 = vlaneseq
        %v1299 = vshrl.u32 %v1298, 7
        %v1300 = vsub.s32 %v925, %v1299
        %v1301 = vrot.slane %v1178, %v1300
        %v1302 = vlaneseq
        %v1303 = vshrl.u32 %v1302, 7
        %v1304 = vsub.s32 %v925, %v1303
        %v1305 = vrot.slane %v1181, %v1304
        %v1306 = vlaneseq
        %v1307 = vshrl.u32 %v1306, 7
        %v1308 = vsub.s32 %v925, %v1307
        %v1309 = vrot.slane %v1184, %v1308
        %v1310 = vlaneseq
        %v1311 = vshrl.u32 %v1310, 7
        %v1312 = vsub.s32 %v925, %v1311
        %v1313 = vrot.slane %v1187, %v1312
        %v1314 = vlaneseq
        %v1315 = vshrl.u32 %v1314, 7
        %v1316 = vsub.s32 %v925, %v1315
        %v1317 = vrot.slane %v1190, %v1316
        %v1318 = vlaneseq
        %v1319 = vshrl.u32 %v1318, 7
        %v1320 = vsub.s32 %v925, %v1319
        %v1321 = vrot.slane %v1193, %v1320
        %v1322 = vsel %vm1054, %v1201, %v1197
        %v1323 = vsel %vm1056, %v1205, %v1322
        %v1324 = vsel %vm1058, %v1209, %v1323
        %v1325 = vsel %vm1060, %v1213, %v1324
        %v1326 = vsel %vm1062, %v1217, %v1325
        %v1327 = vsel %vm1064, %v1221, %v1326
        %v1328 = vsel %vm1066, %v1225, %v1327
        %v1329 = vsel %vm1054, %v1233, %v1229
        %v1330 = vsel %vm1056, %v1237, %v1329
        %v1331 = vsel %vm1058, %v1241, %v1330
        %v1332 = vsel %vm1060, %v1245, %v1331
        %v1333 = vsel %vm1062, %v1249, %v1332
        %v1334 = vsel %vm1064, %v1253, %v1333
        %v1335 = vsel %vm1066, %v1257, %v1334
        %v1336 = vsel %vm1054, %v1265, %v1261
        %v1337 = vsel %vm1056, %v1269, %v1336
        %v1338 = vsel %vm1058, %v1273, %v1337
        %v1339 = vsel %vm1060, %v1277, %v1338
        %v1340 = vsel %vm1062, %v1281, %v1339
        %v1341 = vsel %vm1064, %v1285, %v1340
        %v1342 = vsel %vm1066, %v1289, %v1341
        %v1343 = vsel %vm1054, %v1297, %v1293
        %v1344 = vsel %vm1056, %v1301, %v1343
        %v1345 = vsel %vm1058, %v1305, %v1344
        %v1346 = vsel %vm1060, %v1309, %v1345
        %v1347 = vsel %vm1062, %v1313, %v1346
        %v1348 = vsel %vm1064, %v1317, %v1347
        %v1349 = vsel %vm1066, %v1321, %v1348
        %s1354 = scalar_lea.vmem %s159, 32
        %1355 = vst.msk [vmem:[%s1354] sm:$0xff] %vm1093, %v1328
        %1356 = vst.msk [vmem:[%s1354 + $0x8] sm:$0xff] %vm1093, %v1335
        %1357 = vst.msk [vmem:[%s1354 + $0x10] sm:$0xff] %vm1093, %v1342
        %1358 = vst.msk [vmem:[%s1354 + $0x18] sm:$0xff] %vm1093, %v1349
        %v1359 = vld [vmem:[%s130] sm:$0xff]
        %v1360 = vld [vmem:[%s130 + $0x8] sm:$0xff]
        %v1361 = vld [vmem:[%s130 + $0x10] sm:$0xff]
        %v1362 = vld [vmem:[%s130 + $0x18] sm:$0xff]
        %1367 = vrot.lane.b32.xlu0 %v1359, 126
        %v1368 = vpop.permute.xlu0 %1367
        %1369 = vrot.lane.b32.xlu0 %v1360, 126
        %v1370 = vpop.permute.xlu0 %1369
        %1371 = vrot.lane.b32.xlu0 %v1361, 126
        %v1372 = vpop.permute.xlu0 %1371
        %1373 = vrot.lane.b32.xlu0 %v1362, 126
        %v1374 = vpop.permute.xlu0 %1373
        %1375 = vrot.lane.b32.xlu0 %v1359, 124
        %v1376 = vpop.permute.xlu0 %1375
        %1377 = vrot.lane.b32.xlu0 %v1360, 124
        %v1378 = vpop.permute.xlu0 %1377
        %1379 = vrot.lane.b32.xlu0 %v1361, 124
        %v1380 = vpop.permute.xlu0 %1379
        %1381 = vrot.lane.b32.xlu0 %v1362, 124
        %v1382 = vpop.permute.xlu0 %1381
        %1383 = vrot.lane.b32.xlu0 %v1359, 122
        %v1384 = vpop.permute.xlu0 %1383
        %1385 = vrot.lane.b32.xlu0 %v1360, 122
        %v1386 = vpop.permute.xlu0 %1385
        %1387 = vrot.lane.b32.xlu0 %v1361, 122
        %v1388 = vpop.permute.xlu0 %1387
        %1389 = vrot.lane.b32.xlu0 %v1362, 122
        %v1390 = vpop.permute.xlu0 %1389
        %1391 = vrot.lane.b32.xlu0 %v1359, 120
        %v1392 = vpop.permute.xlu0 %1391
        %1393 = vrot.lane.b32.xlu0 %v1360, 120
        %v1394 = vpop.permute.xlu0 %1393
        %1395 = vrot.lane.b32.xlu0 %v1361, 120
        %v1396 = vpop.permute.xlu0 %1395
        %1397 = vrot.lane.b32.xlu0 %v1362, 120
        %v1398 = vpop.permute.xlu0 %1397
        %1399 = vrot.lane.b32.xlu0 %v1359, 118
        %v1400 = vpop.permute.xlu0 %1399
        %1401 = vrot.lane.b32.xlu0 %v1360, 118
        %v1402 = vpop.permute.xlu0 %1401
        %1403 = vrot.lane.b32.xlu0 %v1361, 118
        %v1404 = vpop.permute.xlu0 %1403
        %1405 = vrot.lane.b32.xlu0 %v1362, 118
        %v1406 = vpop.permute.xlu0 %1405
        %1407 = vrot.lane.b32.xlu0 %v1359, 116
        %v1408 = vpop.permute.xlu0 %1407
        %1409 = vrot.lane.b32.xlu0 %v1360, 116
        %v1410 = vpop.permute.xlu0 %1409
        %1411 = vrot.lane.b32.xlu0 %v1361, 116
        %v1412 = vpop.permute.xlu0 %1411
        %1413 = vrot.lane.b32.xlu0 %v1362, 116
        %v1414 = vpop.permute.xlu0 %1413
        %1415 = vrot.lane.b32.xlu0 %v1359, 114
        %v1416 = vpop.permute.xlu0 %1415
        %1417 = vrot.lane.b32.xlu0 %v1360, 114
        %v1418 = vpop.permute.xlu0 %1417
        %1419 = vrot.lane.b32.xlu0 %v1361, 114
        %v1420 = vpop.permute.xlu0 %1419
        %1421 = vrot.lane.b32.xlu0 %v1362, 114
        %v1422 = vpop.permute.xlu0 %1421
        %1423 = vrot.lane.b32.xlu0 %v1359, 112
        %v1424 = vpop.permute.xlu0 %1423
        %1425 = vrot.lane.b32.xlu0 %v1368, 112
        %v1426 = vpop.permute.xlu0 %1425
        %1427 = vrot.lane.b32.xlu0 %v1376, 112
        %v1428 = vpop.permute.xlu0 %1427
        %1429 = vrot.lane.b32.xlu0 %v1384, 112
        %v1430 = vpop.permute.xlu0 %1429
        %1431 = vrot.lane.b32.xlu0 %v1392, 112
        %v1432 = vpop.permute.xlu0 %1431
        %1433 = vrot.lane.b32.xlu0 %v1400, 112
        %v1434 = vpop.permute.xlu0 %1433
        %1435 = vrot.lane.b32.xlu0 %v1408, 112
        %v1436 = vpop.permute.xlu0 %1435
        %1437 = vrot.lane.b32.xlu0 %v1416, 112
        %v1438 = vpop.permute.xlu0 %1437
        %1439 = vrot.lane.b32.xlu0 %v1360, 112
        %v1440 = vpop.permute.xlu0 %1439
        %1441 = vrot.lane.b32.xlu0 %v1370, 112
        %v1442 = vpop.permute.xlu0 %1441
        %1443 = vrot.lane.b32.xlu0 %v1378, 112
        %v1444 = vpop.permute.xlu0 %1443
        %1445 = vrot.lane.b32.xlu0 %v1386, 112
        %v1446 = vpop.permute.xlu0 %1445
        %1447 = vrot.lane.b32.xlu0 %v1394, 112
        %v1448 = vpop.permute.xlu0 %1447
        %1449 = vrot.lane.b32.xlu0 %v1402, 112
        %v1450 = vpop.permute.xlu0 %1449
        %1451 = vrot.lane.b32.xlu0 %v1410, 112
        %v1452 = vpop.permute.xlu0 %1451
        %1453 = vrot.lane.b32.xlu0 %v1418, 112
        %v1454 = vpop.permute.xlu0 %1453
        %1455 = vrot.lane.b32.xlu0 %v1361, 112
        %v1456 = vpop.permute.xlu0 %1455
        %1457 = vrot.lane.b32.xlu0 %v1372, 112
        %v1458 = vpop.permute.xlu0 %1457
        %1459 = vrot.lane.b32.xlu0 %v1380, 112
        %v1460 = vpop.permute.xlu0 %1459
        %1461 = vrot.lane.b32.xlu0 %v1388, 112
        %v1462 = vpop.permute.xlu0 %1461
        %1463 = vrot.lane.b32.xlu0 %v1396, 112
        %v1464 = vpop.permute.xlu0 %1463
        %1465 = vrot.lane.b32.xlu0 %v1404, 112
        %v1466 = vpop.permute.xlu0 %1465
        %1467 = vrot.lane.b32.xlu0 %v1412, 112
        %v1468 = vpop.permute.xlu0 %1467
        %1469 = vrot.lane.b32.xlu0 %v1420, 112
        %v1470 = vpop.permute.xlu0 %1469
        %1471 = vrot.lane.b32.xlu0 %v1362, 112
        %v1472 = vpop.permute.xlu0 %1471
        %1473 = vrot.lane.b32.xlu0 %v1374, 112
        %v1474 = vpop.permute.xlu0 %1473
        %1475 = vrot.lane.b32.xlu0 %v1382, 112
        %v1476 = vpop.permute.xlu0 %1475
        %1477 = vrot.lane.b32.xlu0 %v1390, 112
        %v1478 = vpop.permute.xlu0 %1477
        %1479 = vrot.lane.b32.xlu0 %v1398, 112
        %v1480 = vpop.permute.xlu0 %1479
        %1481 = vrot.lane.b32.xlu0 %v1406, 112
        %v1482 = vpop.permute.xlu0 %1481
        %1483 = vrot.lane.b32.xlu0 %v1414, 112
        %v1484 = vpop.permute.xlu0 %1483
        %1485 = vrot.lane.b32.xlu0 %v1422, 112
        %v1486 = vpop.permute.xlu0 %1485
        %v1519 = vcombine.low %v1424, %v1428
        %v1520 = vcombine.high %v1424, %v1428
        %v1522 = vunpack.c.l.s4 1983009808
        %v1523 = vunpack.c.0.s8 %v1522
        %v1524 = vlaneseq
        %v1525 = vshrl.u32 %v1524, 7
        %v1526 = vsub.s32 %v1523, %v1525
        %v1527 = vrot.slane %v1519, %v1526
        %v1529 = vunpack.c.l.s4 1983009808
        %v1530 = vunpack.c.0.s8 %v1529
        %v1531 = vlaneseq
        %v1532 = vshrl.u32 %v1531, 7
        %v1533 = vsub.s32 %v1530, %v1532
        %v1534 = vrot.slane %v1520, %v1533
        %v1535 = vcombine.low %v1426, %v1430
        %v1536 = vcombine.high %v1426, %v1430
        %v1538 = vunpack.c.l.s4 1983009808
        %v1539 = vunpack.c.0.s8 %v1538
        %v1540 = vlaneseq
        %v1541 = vshrl.u32 %v1540, 7
        %v1542 = vsub.s32 %v1539, %v1541
        %v1543 = vrot.slane %v1535, %v1542
        %v1545 = vunpack.c.l.s4 1983009808
        %v1546 = vunpack.c.0.s8 %v1545
        %v1547 = vlaneseq
        %v1548 = vshrl.u32 %v1547, 7
        %v1549 = vsub.s32 %v1546, %v1548
        %v1550 = vrot.slane %v1536, %v1549
        %v1551 = vcombine.low %v1432, %v1436
        %v1552 = vcombine.high %v1432, %v1436
        %v1554 = vunpack.c.l.s4 1983009808
        %v1555 = vunpack.c.0.s8 %v1554
        %v1556 = vlaneseq
        %v1557 = vshrl.u32 %v1556, 7
        %v1558 = vsub.s32 %v1555, %v1557
        %v1559 = vrot.slane %v1551, %v1558
        %v1561 = vunpack.c.l.s4 1983009808
        %v1562 = vunpack.c.0.s8 %v1561
        %v1563 = vlaneseq
        %v1564 = vshrl.u32 %v1563, 7
        %v1565 = vsub.s32 %v1562, %v1564
        %v1566 = vrot.slane %v1552, %v1565
        %v1567 = vcombine.low %v1434, %v1438
        %v1568 = vcombine.high %v1434, %v1438
        %v1570 = vunpack.c.l.s4 1983009808
        %v1571 = vunpack.c.0.s8 %v1570
        %v1572 = vlaneseq
        %v1573 = vshrl.u32 %v1572, 7
        %v1574 = vsub.s32 %v1571, %v1573
        %v1575 = vrot.slane %v1567, %v1574
        %v1577 = vunpack.c.l.s4 1983009808
        %v1578 = vunpack.c.0.s8 %v1577
        %v1579 = vlaneseq
        %v1580 = vshrl.u32 %v1579, 7
        %v1581 = vsub.s32 %v1578, %v1580
        %v1582 = vrot.slane %v1568, %v1581
        %v1583 = vcombine.low %v1527, %v1543
        %v1584 = vcombine.high %v1527, %v1543
        %v1586 = vunpack.c.l.s4 1934713408
        %v1587 = vunpack.c.0.s8 %v1586
        %v1588 = vlaneseq
        %v1589 = vshrl.u32 %v1588, 7
        %v1590 = vsub.s32 %v1587, %v1589
        %v1591 = vrot.slane %v1583, %v1590
        %v1593 = vunpack.c.l.s4 1934713408
        %v1594 = vunpack.c.0.s8 %v1593
        %v1595 = vlaneseq
        %v1596 = vshrl.u32 %v1595, 7
        %v1597 = vsub.s32 %v1594, %v1596
        %v1598 = vrot.slane %v1584, %v1597
        %v1599 = vcombine.low %v1534, %v1550
        %v1600 = vcombine.high %v1534, %v1550
        %v1602 = vunpack.c.l.s4 1934713408
        %v1603 = vunpack.c.0.s8 %v1602
        %v1604 = vlaneseq
        %v1605 = vshrl.u32 %v1604, 7
        %v1606 = vsub.s32 %v1603, %v1605
        %v1607 = vrot.slane %v1599, %v1606
        %v1609 = vunpack.c.l.s4 1934713408
        %v1610 = vunpack.c.0.s8 %v1609
        %v1611 = vlaneseq
        %v1612 = vshrl.u32 %v1611, 7
        %v1613 = vsub.s32 %v1610, %v1612
        %v1614 = vrot.slane %v1600, %v1613
        %v1615 = vcombine.low %v1559, %v1575
        %v1616 = vcombine.high %v1559, %v1575
        %v1618 = vunpack.c.l.s4 1934713408
        %v1619 = vunpack.c.0.s8 %v1618
        %v1620 = vlaneseq
        %v1621 = vshrl.u32 %v1620, 7
        %v1622 = vsub.s32 %v1619, %v1621
        %v1623 = vrot.slane %v1615, %v1622
        %v1625 = vunpack.c.l.s4 1934713408
        %v1626 = vunpack.c.0.s8 %v1625
        %v1627 = vlaneseq
        %v1628 = vshrl.u32 %v1627, 7
        %v1629 = vsub.s32 %v1626, %v1628
        %v1630 = vrot.slane %v1616, %v1629
        %v1631 = vcombine.low %v1566, %v1582
        %v1632 = vcombine.high %v1566, %v1582
        %v1634 = vunpack.c.l.s4 1934713408
        %v1635 = vunpack.c.0.s8 %v1634
        %v1636 = vlaneseq
        %v1637 = vshrl.u32 %v1636, 7
        %v1638 = vsub.s32 %v1635, %v1637
        %v1639 = vrot.slane %v1631, %v1638
        %v1641 = vunpack.c.l.s4 1934713408
        %v1642 = vunpack.c.0.s8 %v1641
        %v1643 = vlaneseq
        %v1644 = vshrl.u32 %v1643, 7
        %v1645 = vsub.s32 %v1642, %v1644
        %v1646 = vrot.slane %v1632, %v1645
        %v1647 = vcombine.low %v1591, %v1623
        %v1648 = vcombine.high %v1591, %v1623
        %v1649 = vcombine.low %v1598, %v1630
        %v1650 = vcombine.high %v1598, %v1630
        %v1651 = vcombine.low %v1607, %v1639
        %v1652 = vcombine.high %v1607, %v1639
        %v1653 = vcombine.low %v1614, %v1646
        %v1654 = vcombine.high %v1614, %v1646
        %v1655 = vcombine.low %v1440, %v1444
        %v1656 = vcombine.high %v1440, %v1444
        %v1658 = vunpack.c.l.s4 1983009808
        %v1659 = vunpack.c.0.s8 %v1658
        %v1660 = vlaneseq
        %v1661 = vshrl.u32 %v1660, 7
        %v1662 = vsub.s32 %v1659, %v1661
        %v1663 = vrot.slane %v1655, %v1662
        %v1665 = vunpack.c.l.s4 1983009808
        %v1666 = vunpack.c.0.s8 %v1665
        %v1667 = vlaneseq
        %v1668 = vshrl.u32 %v1667, 7
        %v1669 = vsub.s32 %v1666, %v1668
        %v1670 = vrot.slane %v1656, %v1669
        %v1671 = vcombine.low %v1442, %v1446
        %v1672 = vcombine.high %v1442, %v1446
        %v1674 = vunpack.c.l.s4 1983009808
        %v1675 = vunpack.c.0.s8 %v1674
        %v1676 = vlaneseq
        %v1677 = vshrl.u32 %v1676, 7
        %v1678 = vsub.s32 %v1675, %v1677
        %v1679 = vrot.slane %v1671, %v1678
        %v1681 = vunpack.c.l.s4 1983009808
        %v1682 = vunpack.c.0.s8 %v1681
        %v1683 = vlaneseq
        %v1684 = vshrl.u32 %v1683, 7
        %v1685 = vsub.s32 %v1682, %v1684
        %v1686 = vrot.slane %v1672, %v1685
        %v1687 = vcombine.low %v1448, %v1452
        %v1688 = vcombine.high %v1448, %v1452
        %v1690 = vunpack.c.l.s4 1983009808
        %v1691 = vunpack.c.0.s8 %v1690
        %v1692 = vlaneseq
        %v1693 = vshrl.u32 %v1692, 7
        %v1694 = vsub.s32 %v1691, %v1693
        %v1695 = vrot.slane %v1687, %v1694
        %v1697 = vunpack.c.l.s4 1983009808
        %v1698 = vunpack.c.0.s8 %v1697
        %v1699 = vlaneseq
        %v1700 = vshrl.u32 %v1699, 7
        %v1701 = vsub.s32 %v1698, %v1700
        %v1702 = vrot.slane %v1688, %v1701
        %v1703 = vcombine.low %v1450, %v1454
        %v1704 = vcombine.high %v1450, %v1454
        %v1706 = vunpack.c.l.s4 1983009808
        %v1707 = vunpack.c.0.s8 %v1706
        %v1708 = vlaneseq
        %v1709 = vshrl.u32 %v1708, 7
        %v1710 = vsub.s32 %v1707, %v1709
        %v1711 = vrot.slane %v1703, %v1710
        %v1713 = vunpack.c.l.s4 1983009808
        %v1714 = vunpack.c.0.s8 %v1713
        %v1715 = vlaneseq
        %v1716 = vshrl.u32 %v1715, 7
        %v1717 = vsub.s32 %v1714, %v1716
        %v1718 = vrot.slane %v1704, %v1717
        %v1719 = vcombine.low %v1663, %v1679
        %v1720 = vcombine.high %v1663, %v1679
        %v1722 = vunpack.c.l.s4 1934713408
        %v1723 = vunpack.c.0.s8 %v1722
        %v1724 = vlaneseq
        %v1725 = vshrl.u32 %v1724, 7
        %v1726 = vsub.s32 %v1723, %v1725
        %v1727 = vrot.slane %v1719, %v1726
        %v1729 = vunpack.c.l.s4 1934713408
        %v1730 = vunpack.c.0.s8 %v1729
        %v1731 = vlaneseq
        %v1732 = vshrl.u32 %v1731, 7
        %v1733 = vsub.s32 %v1730, %v1732
        %v1734 = vrot.slane %v1720, %v1733
        %v1735 = vcombine.low %v1670, %v1686
        %v1736 = vcombine.high %v1670, %v1686
        %v1738 = vunpack.c.l.s4 1934713408
        %v1739 = vunpack.c.0.s8 %v1738
        %v1740 = vlaneseq
        %v1741 = vshrl.u32 %v1740, 7
        %v1742 = vsub.s32 %v1739, %v1741
        %v1743 = vrot.slane %v1735, %v1742
        %v1745 = vunpack.c.l.s4 1934713408
        %v1746 = vunpack.c.0.s8 %v1745
        %v1747 = vlaneseq
        %v1748 = vshrl.u32 %v1747, 7
        %v1749 = vsub.s32 %v1746, %v1748
        %v1750 = vrot.slane %v1736, %v1749
        %v1751 = vcombine.low %v1695, %v1711
        %v1752 = vcombine.high %v1695, %v1711
        %v1754 = vunpack.c.l.s4 1934713408
        %v1755 = vunpack.c.0.s8 %v1754
        %v1756 = vlaneseq
        %v1757 = vshrl.u32 %v1756, 7
        %v1758 = vsub.s32 %v1755, %v1757
        %v1759 = vrot.slane %v1751, %v1758
        %v1761 = vunpack.c.l.s4 1934713408
        %v1762 = vunpack.c.0.s8 %v1761
        %v1763 = vlaneseq
        %v1764 = vshrl.u32 %v1763, 7
        %v1765 = vsub.s32 %v1762, %v1764
        %v1766 = vrot.slane %v1752, %v1765
        %v1767 = vcombine.low %v1702, %v1718
        %v1768 = vcombine.high %v1702, %v1718
        %v1770 = vunpack.c.l.s4 1934713408
        %v1771 = vunpack.c.0.s8 %v1770
        %v1772 = vlaneseq
        %v1773 = vshrl.u32 %v1772, 7
        %v1774 = vsub.s32 %v1771, %v1773
        %v1775 = vrot.slane %v1767, %v1774
        %v1777 = vunpack.c.l.s4 1934713408
        %v1778 = vunpack.c.0.s8 %v1777
        %v1779 = vlaneseq
        %v1780 = vshrl.u32 %v1779, 7
        %v1781 = vsub.s32 %v1778, %v1780
        %v1782 = vrot.slane %v1768, %v1781
        %v1783 = vcombine.low %v1727, %v1759
        %v1784 = vcombine.high %v1727, %v1759
        %v1785 = vcombine.low %v1734, %v1766
        %v1786 = vcombine.high %v1734, %v1766
        %v1787 = vcombine.low %v1743, %v1775
        %v1788 = vcombine.high %v1743, %v1775
        %v1789 = vcombine.low %v1750, %v1782
        %v1790 = vcombine.high %v1750, %v1782
        %v1791 = vcombine.low %v1456, %v1460
        %v1792 = vcombine.high %v1456, %v1460
        %v1794 = vunpack.c.l.s4 1983009808
        %v1795 = vunpack.c.0.s8 %v1794
        %v1796 = vlaneseq
        %v1797 = vshrl.u32 %v1796, 7
        %v1798 = vsub.s32 %v1795, %v1797
        %v1799 = vrot.slane %v1791, %v1798
        %v1801 = vunpack.c.l.s4 1983009808
        %v1802 = vunpack.c.0.s8 %v1801
        %v1803 = vlaneseq
        %v1804 = vshrl.u32 %v1803, 7
        %v1805 = vsub.s32 %v1802, %v1804
        %v1806 = vrot.slane %v1792, %v1805
        %v1807 = vcombine.low %v1458, %v1462
        %v1808 = vcombine.high %v1458, %v1462
        %v1810 = vunpack.c.l.s4 1983009808
        %v1811 = vunpack.c.0.s8 %v1810
        %v1812 = vlaneseq
        %v1813 = vshrl.u32 %v1812, 7
        %v1814 = vsub.s32 %v1811, %v1813
        %v1815 = vrot.slane %v1807, %v1814
        %v1817 = vunpack.c.l.s4 1983009808
        %v1818 = vunpack.c.0.s8 %v1817
        %v1819 = vlaneseq
        %v1820 = vshrl.u32 %v1819, 7
        %v1821 = vsub.s32 %v1818, %v1820
        %v1822 = vrot.slane %v1808, %v1821
        %v1823 = vcombine.low %v1464, %v1468
        %v1824 = vcombine.high %v1464, %v1468
        %v1826 = vunpack.c.l.s4 1983009808
        %v1827 = vunpack.c.0.s8 %v1826
        %v1828 = vlaneseq
        %v1829 = vshrl.u32 %v1828, 7
        %v1830 = vsub.s32 %v1827, %v1829
        %v1831 = vrot.slane %v1823, %v1830
        %v1833 = vunpack.c.l.s4 1983009808
        %v1834 = vunpack.c.0.s8 %v1833
        %v1835 = vlaneseq
        %v1836 = vshrl.u32 %v1835, 7
        %v1837 = vsub.s32 %v1834, %v1836
        %v1838 = vrot.slane %v1824, %v1837
        %v1839 = vcombine.low %v1466, %v1470
        %v1840 = vcombine.high %v1466, %v1470
        %v1842 = vunpack.c.l.s4 1983009808
        %v1843 = vunpack.c.0.s8 %v1842
        %v1844 = vlaneseq
        %v1845 = vshrl.u32 %v1844, 7
        %v1846 = vsub.s32 %v1843, %v1845
        %v1847 = vrot.slane %v1839, %v1846
        %v1849 = vunpack.c.l.s4 1983009808
        %v1850 = vunpack.c.0.s8 %v1849
        %v1851 = vlaneseq
        %v1852 = vshrl.u32 %v1851, 7
        %v1853 = vsub.s32 %v1850, %v1852
        %v1854 = vrot.slane %v1840, %v1853
        %v1855 = vcombine.low %v1799, %v1815
        %v1856 = vcombine.high %v1799, %v1815
        %v1858 = vunpack.c.l.s4 1934713408
        %v1859 = vunpack.c.0.s8 %v1858
        %v1860 = vlaneseq
        %v1861 = vshrl.u32 %v1860, 7
        %v1862 = vsub.s32 %v1859, %v1861
        %v1863 = vrot.slane %v1855, %v1862
        %v1865 = vunpack.c.l.s4 1934713408
        %v1866 = vunpack.c.0.s8 %v1865
        %v1867 = vlaneseq
        %v1868 = vshrl.u32 %v1867, 7
        %v1869 = vsub.s32 %v1866, %v1868
        %v1870 = vrot.slane %v1856, %v1869
        %v1871 = vcombine.low %v1806, %v1822
        %v1872 = vcombine.high %v1806, %v1822
        %v1874 = vunpack.c.l.s4 1934713408
        %v1875 = vunpack.c.0.s8 %v1874
        %v1876 = vlaneseq
        %v1877 = vshrl.u32 %v1876, 7
        %v1878 = vsub.s32 %v1875, %v1877
        %v1879 = vrot.slane %v1871, %v1878
        %v1881 = vunpack.c.l.s4 1934713408
        %v1882 = vunpack.c.0.s8 %v1881
        %v1883 = vlaneseq
        %v1884 = vshrl.u32 %v1883, 7
        %v1885 = vsub.s32 %v1882, %v1884
        %v1886 = vrot.slane %v1872, %v1885
        %v1887 = vcombine.low %v1831, %v1847
        %v1888 = vcombine.high %v1831, %v1847
        %v1890 = vunpack.c.l.s4 1934713408
        %v1891 = vunpack.c.0.s8 %v1890
        %v1892 = vlaneseq
        %v1893 = vshrl.u32 %v1892, 7
        %v1894 = vsub.s32 %v1891, %v1893
        %v1895 = vrot.slane %v1887, %v1894
        %v1897 = vunpack.c.l.s4 1934713408
        %v1898 = vunpack.c.0.s8 %v1897
        %v1899 = vlaneseq
        %v1900 = vshrl.u32 %v1899, 7
        %v1901 = vsub.s32 %v1898, %v1900
        %v1902 = vrot.slane %v1888, %v1901
        %v1903 = vcombine.low %v1838, %v1854
        %v1904 = vcombine.high %v1838, %v1854
        %v1906 = vunpack.c.l.s4 1934713408
        %v1907 = vunpack.c.0.s8 %v1906
        %v1908 = vlaneseq
        %v1909 = vshrl.u32 %v1908, 7
        %v1910 = vsub.s32 %v1907, %v1909
        %v1911 = vrot.slane %v1903, %v1910
        %v1913 = vunpack.c.l.s4 1934713408
        %v1914 = vunpack.c.0.s8 %v1913
        %v1915 = vlaneseq
        %v1916 = vshrl.u32 %v1915, 7
        %v1917 = vsub.s32 %v1914, %v1916
        %v1918 = vrot.slane %v1904, %v1917
        %v1919 = vcombine.low %v1863, %v1895
        %v1920 = vcombine.high %v1863, %v1895
        %v1921 = vcombine.low %v1870, %v1902
        %v1922 = vcombine.high %v1870, %v1902
        %v1923 = vcombine.low %v1879, %v1911
        %v1924 = vcombine.high %v1879, %v1911
        %v1925 = vcombine.low %v1886, %v1918
        %v1926 = vcombine.high %v1886, %v1918
        %v1927 = vcombine.low %v1472, %v1476
        %v1928 = vcombine.high %v1472, %v1476
        %v1930 = vunpack.c.l.s4 1983009808
        %v1931 = vunpack.c.0.s8 %v1930
        %v1932 = vlaneseq
        %v1933 = vshrl.u32 %v1932, 7
        %v1934 = vsub.s32 %v1931, %v1933
        %v1935 = vrot.slane %v1927, %v1934
        %v1937 = vunpack.c.l.s4 1983009808
        %v1938 = vunpack.c.0.s8 %v1937
        %v1939 = vlaneseq
        %v1940 = vshrl.u32 %v1939, 7
        %v1941 = vsub.s32 %v1938, %v1940
        %v1942 = vrot.slane %v1928, %v1941
        %v1943 = vcombine.low %v1474, %v1478
        %v1944 = vcombine.high %v1474, %v1478
        %v1946 = vunpack.c.l.s4 1983009808
        %v1947 = vunpack.c.0.s8 %v1946
        %v1948 = vlaneseq
        %v1949 = vshrl.u32 %v1948, 7
        %v1950 = vsub.s32 %v1947, %v1949
        %v1951 = vrot.slane %v1943, %v1950
        %v1953 = vunpack.c.l.s4 1983009808
        %v1954 = vunpack.c.0.s8 %v1953
        %v1955 = vlaneseq
        %v1956 = vshrl.u32 %v1955, 7
        %v1957 = vsub.s32 %v1954, %v1956
        %v1958 = vrot.slane %v1944, %v1957
        %v1959 = vcombine.low %v1480, %v1484
        %v1960 = vcombine.high %v1480, %v1484
        %v1962 = vunpack.c.l.s4 1983009808
        %v1963 = vunpack.c.0.s8 %v1962
        %v1964 = vlaneseq
        %v1965 = vshrl.u32 %v1964, 7
        %v1966 = vsub.s32 %v1963, %v1965
        %v1967 = vrot.slane %v1959, %v1966
        %v1969 = vunpack.c.l.s4 1983009808
        %v1970 = vunpack.c.0.s8 %v1969
        %v1971 = vlaneseq
        %v1972 = vshrl.u32 %v1971, 7
        %v1973 = vsub.s32 %v1970, %v1972
        %v1974 = vrot.slane %v1960, %v1973
        %v1975 = vcombine.low %v1482, %v1486
        %v1976 = vcombine.high %v1482, %v1486
        %v1978 = vunpack.c.l.s4 1983009808
        %v1979 = vunpack.c.0.s8 %v1978
        %v1980 = vlaneseq
        %v1981 = vshrl.u32 %v1980, 7
        %v1982 = vsub.s32 %v1979, %v1981
        %v1983 = vrot.slane %v1975, %v1982
        %v1985 = vunpack.c.l.s4 1983009808
        %v1986 = vunpack.c.0.s8 %v1985
        %v1987 = vlaneseq
        %v1988 = vshrl.u32 %v1987, 7
        %v1989 = vsub.s32 %v1986, %v1988
        %v1990 = vrot.slane %v1976, %v1989
        %v1991 = vcombine.low %v1935, %v1951
        %v1992 = vcombine.high %v1935, %v1951
        %v1994 = vunpack.c.l.s4 1934713408
        %v1995 = vunpack.c.0.s8 %v1994
        %v1996 = vlaneseq
        %v1997 = vshrl.u32 %v1996, 7
        %v1998 = vsub.s32 %v1995, %v1997
        %v1999 = vrot.slane %v1991, %v1998
        %v2001 = vunpack.c.l.s4 1934713408
        %v2002 = vunpack.c.0.s8 %v2001
        %v2003 = vlaneseq
        %v2004 = vshrl.u32 %v2003, 7
        %v2005 = vsub.s32 %v2002, %v2004
        %v2006 = vrot.slane %v1992, %v2005
        %v2007 = vcombine.low %v1942, %v1958
        %v2008 = vcombine.high %v1942, %v1958
        %v2010 = vunpack.c.l.s4 1934713408
        %v2011 = vunpack.c.0.s8 %v2010
        %v2012 = vlaneseq
        %v2013 = vshrl.u32 %v2012, 7
        %v2014 = vsub.s32 %v2011, %v2013
        %v2015 = vrot.slane %v2007, %v2014
        %v2017 = vunpack.c.l.s4 1934713408
        %v2018 = vunpack.c.0.s8 %v2017
        %v2019 = vlaneseq
        %v2020 = vshrl.u32 %v2019, 7
        %v2021 = vsub.s32 %v2018, %v2020
        %v2022 = vrot.slane %v2008, %v2021
        %v2023 = vcombine.low %v1967, %v1983
        %v2024 = vcombine.high %v1967, %v1983
        %v2026 = vunpack.c.l.s4 1934713408
        %v2027 = vunpack.c.0.s8 %v2026
        %v2028 = vlaneseq
        %v2029 = vshrl.u32 %v2028, 7
        %v2030 = vsub.s32 %v2027, %v2029
        %v2031 = vrot.slane %v2023, %v2030
        %v2033 = vunpack.c.l.s4 1934713408
        %v2034 = vunpack.c.0.s8 %v2033
        %v2035 = vlaneseq
        %v2036 = vshrl.u32 %v2035, 7
        %v2037 = vsub.s32 %v2034, %v2036
        %v2038 = vrot.slane %v2024, %v2037
        %v2039 = vcombine.low %v1974, %v1990
        %v2040 = vcombine.high %v1974, %v1990
        %v2042 = vunpack.c.l.s4 1934713408
        %v2043 = vunpack.c.0.s8 %v2042
        %v2044 = vlaneseq
        %v2045 = vshrl.u32 %v2044, 7
        %v2046 = vsub.s32 %v2043, %v2045
        %v2047 = vrot.slane %v2039, %v2046
        %v2049 = vunpack.c.l.s4 1934713408
        %v2050 = vunpack.c.0.s8 %v2049
        %v2051 = vlaneseq
        %v2052 = vshrl.u32 %v2051, 7
        %v2053 = vsub.s32 %v2050, %v2052
        %v2054 = vrot.slane %v2040, %v2053
        %v2055 = vcombine.low %v1999, %v2031
        %v2056 = vcombine.high %v1999, %v2031
        %v2057 = vcombine.low %v2006, %v2038
        %v2058 = vcombine.high %v2006, %v2038
        %v2059 = vcombine.low %v2015, %v2047
        %v2060 = vcombine.high %v2015, %v2047
        %v2061 = vcombine.low %v2022, %v2054
        %v2062 = vcombine.high %v2022, %v2054
        %2095 = vset.pattern.permute.xlu0 0
        %2096 = vperm.xlu0 %2095, %v1647
        %v2097 = vpop.permute.xlu0 %2096
        %2098 = vset.pattern.permute.xlu0 0
        %2099 = vperm.xlu0 %2098, %v1648
        %v2100 = vpop.permute.xlu0 %2099
        %2101 = vset.pattern.permute.xlu0 0
        %2102 = vperm.xlu0 %2101, %v1649
        %v2103 = vpop.permute.xlu0 %2102
        %2104 = vset.pattern.permute.xlu0 0
        %2105 = vperm.xlu0 %2104, %v1650
        %v2106 = vpop.permute.xlu0 %2105
        %2107 = vset.pattern.permute.xlu0 0
        %2108 = vperm.xlu0 %2107, %v1651
        %v2109 = vpop.permute.xlu0 %2108
        %2110 = vset.pattern.permute.xlu0 0
        %2111 = vperm.xlu0 %2110, %v1652
        %v2112 = vpop.permute.xlu0 %2111
        %2113 = vset.pattern.permute.xlu0 0
        %2114 = vperm.xlu0 %2113, %v1653
        %v2115 = vpop.permute.xlu0 %2114
        %2116 = vset.pattern.permute.xlu0 0
        %2117 = vperm.xlu0 %2116, %v1654
        %v2118 = vpop.permute.xlu0 %2117
        %2119 = vset.pattern.permute.xlu0 0
        %2120 = vperm.xlu0 %2119, %v1783
        %v2121 = vpop.permute.xlu0 %2120
        %2122 = vset.pattern.permute.xlu0 0
        %2123 = vperm.xlu0 %2122, %v1784
        %v2124 = vpop.permute.xlu0 %2123
        %2125 = vset.pattern.permute.xlu0 0
        %2126 = vperm.xlu0 %2125, %v1785
        %v2127 = vpop.permute.xlu0 %2126
        %2128 = vset.pattern.permute.xlu0 0
        %2129 = vperm.xlu0 %2128, %v1786
        %v2130 = vpop.permute.xlu0 %2129
        %2131 = vset.pattern.permute.xlu0 0
        %2132 = vperm.xlu0 %2131, %v1787
        %v2133 = vpop.permute.xlu0 %2132
        %2134 = vset.pattern.permute.xlu0 0
        %2135 = vperm.xlu0 %2134, %v1788
        %v2136 = vpop.permute.xlu0 %2135
        %2137 = vset.pattern.permute.xlu0 0
        %2138 = vperm.xlu0 %2137, %v1789
        %v2139 = vpop.permute.xlu0 %2138
        %2140 = vset.pattern.permute.xlu0 0
        %2141 = vperm.xlu0 %2140, %v1790
        %v2142 = vpop.permute.xlu0 %2141
        %2143 = vset.pattern.permute.xlu0 0
        %2144 = vperm.xlu0 %2143, %v1919
        %v2145 = vpop.permute.xlu0 %2144
        %2146 = vset.pattern.permute.xlu0 0
        %2147 = vperm.xlu0 %2146, %v1920
        %v2148 = vpop.permute.xlu0 %2147
        %2149 = vset.pattern.permute.xlu0 0
        %2150 = vperm.xlu0 %2149, %v1921
        %v2151 = vpop.permute.xlu0 %2150
        %2152 = vset.pattern.permute.xlu0 0
        %2153 = vperm.xlu0 %2152, %v1922
        %v2154 = vpop.permute.xlu0 %2153
        %2155 = vset.pattern.permute.xlu0 0
        %2156 = vperm.xlu0 %2155, %v1923
        %v2157 = vpop.permute.xlu0 %2156
        %2158 = vset.pattern.permute.xlu0 0
        %2159 = vperm.xlu0 %2158, %v1924
        %v2160 = vpop.permute.xlu0 %2159
        %2161 = vset.pattern.permute.xlu0 0
        %2162 = vperm.xlu0 %2161, %v1925
        %v2163 = vpop.permute.xlu0 %2162
        %2164 = vset.pattern.permute.xlu0 0
        %2165 = vperm.xlu0 %2164, %v1926
        %v2166 = vpop.permute.xlu0 %2165
        %2167 = vset.pattern.permute.xlu0 0
        %2168 = vperm.xlu0 %2167, %v2055
        %v2169 = vpop.permute.xlu0 %2168
        %2170 = vset.pattern.permute.xlu0 0
        %2171 = vperm.xlu0 %2170, %v2056
        %v2172 = vpop.permute.xlu0 %2171
        %2173 = vset.pattern.permute.xlu0 0
        %2174 = vperm.xlu0 %2173, %v2057
        %v2175 = vpop.permute.xlu0 %2174
        %2176 = vset.pattern.permute.xlu0 0
        %2177 = vperm.xlu0 %2176, %v2058
        %v2178 = vpop.permute.xlu0 %2177
        %2179 = vset.pattern.permute.xlu0 0
        %2180 = vperm.xlu0 %2179, %v2059
        %v2181 = vpop.permute.xlu0 %2180
        %2182 = vset.pattern.permute.xlu0 0
        %2183 = vperm.xlu0 %2182, %v2060
        %v2184 = vpop.permute.xlu0 %2183
        %2185 = vset.pattern.permute.xlu0 0
        %2186 = vperm.xlu0 %2185, %v2061
        %v2187 = vpop.permute.xlu0 %2186
        %2188 = vset.pattern.permute.xlu0 0
        %2189 = vperm.xlu0 %2188, %v2062
        %v2190 = vpop.permute.xlu0 %2189
        %v2191 = vlaneseq
        %v2192 = vshrl.u32 %v2191, 7
        %v2193 = vsub.s32 %v925, %v2192
        %v2194 = vrot.slane %v2097, %v2193
        %v2195 = vlaneseq
        %v2196 = vshrl.u32 %v2195, 7
        %v2197 = vsub.s32 %v925, %v2196
        %v2198 = vrot.slane %v2100, %v2197
        %v2199 = vlaneseq
        %v2200 = vshrl.u32 %v2199, 7
        %v2201 = vsub.s32 %v925, %v2200
        %v2202 = vrot.slane %v2103, %v2201
        %v2203 = vlaneseq
        %v2204 = vshrl.u32 %v2203, 7
        %v2205 = vsub.s32 %v925, %v2204
        %v2206 = vrot.slane %v2106, %v2205
        %v2207 = vlaneseq
        %v2208 = vshrl.u32 %v2207, 7
        %v2209 = vsub.s32 %v925, %v2208
        %v2210 = vrot.slane %v2109, %v2209
        %v2211 = vlaneseq
        %v2212 = vshrl.u32 %v2211, 7
        %v2213 = vsub.s32 %v925, %v2212
        %v2214 = vrot.slane %v2112, %v2213
        %v2215 = vlaneseq
        %v2216 = vshrl.u32 %v2215, 7
        %v2217 = vsub.s32 %v925, %v2216
        %v2218 = vrot.slane %v2115, %v2217
        %v2219 = vlaneseq
        %v2220 = vshrl.u32 %v2219, 7
        %v2221 = vsub.s32 %v925, %v2220
        %v2222 = vrot.slane %v2118, %v2221
        %v2223 = vlaneseq
        %v2224 = vshrl.u32 %v2223, 7
        %v2225 = vsub.s32 %v925, %v2224
        %v2226 = vrot.slane %v2121, %v2225
        %v2227 = vlaneseq
        %v2228 = vshrl.u32 %v2227, 7
        %v2229 = vsub.s32 %v925, %v2228
        %v2230 = vrot.slane %v2124, %v2229
        %v2231 = vlaneseq
        %v2232 = vshrl.u32 %v2231, 7
        %v2233 = vsub.s32 %v925, %v2232
        %v2234 = vrot.slane %v2127, %v2233
        %v2235 = vlaneseq
        %v2236 = vshrl.u32 %v2235, 7
        %v2237 = vsub.s32 %v925, %v2236
        %v2238 = vrot.slane %v2130, %v2237
        %v2239 = vlaneseq
        %v2240 = vshrl.u32 %v2239, 7
        %v2241 = vsub.s32 %v925, %v2240
        %v2242 = vrot.slane %v2133, %v2241
        %v2243 = vlaneseq
        %v2244 = vshrl.u32 %v2243, 7
        %v2245 = vsub.s32 %v925, %v2244
        %v2246 = vrot.slane %v2136, %v2245
        %v2247 = vlaneseq
        %v2248 = vshrl.u32 %v2247, 7
        %v2249 = vsub.s32 %v925, %v2248
        %v2250 = vrot.slane %v2139, %v2249
        %v2251 = vlaneseq
        %v2252 = vshrl.u32 %v2251, 7
        %v2253 = vsub.s32 %v925, %v2252
        %v2254 = vrot.slane %v2142, %v2253
        %v2255 = vlaneseq
        %v2256 = vshrl.u32 %v2255, 7
        %v2257 = vsub.s32 %v925, %v2256
        %v2258 = vrot.slane %v2145, %v2257
        %v2259 = vlaneseq
        %v2260 = vshrl.u32 %v2259, 7
        %v2261 = vsub.s32 %v925, %v2260
        %v2262 = vrot.slane %v2148, %v2261
        %v2263 = vlaneseq
        %v2264 = vshrl.u32 %v2263, 7
        %v2265 = vsub.s32 %v925, %v2264
        %v2266 = vrot.slane %v2151, %v2265
        %v2267 = vlaneseq
        %v2268 = vshrl.u32 %v2267, 7
        %v2269 = vsub.s32 %v925, %v2268
        %v2270 = vrot.slane %v2154, %v2269
        %v2271 = vlaneseq
        %v2272 = vshrl.u32 %v2271, 7
        %v2273 = vsub.s32 %v925, %v2272
        %v2274 = vrot.slane %v2157, %v2273
        %v2275 = vlaneseq
        %v2276 = vshrl.u32 %v2275, 7
        %v2277 = vsub.s32 %v925, %v2276
        %v2278 = vrot.slane %v2160, %v2277
        %v2279 = vlaneseq
        %v2280 = vshrl.u32 %v2279, 7
        %v2281 = vsub.s32 %v925, %v2280
        %v2282 = vrot.slane %v2163, %v2281
        %v2283 = vlaneseq
        %v2284 = vshrl.u32 %v2283, 7
        %v2285 = vsub.s32 %v925, %v2284
        %v2286 = vrot.slane %v2166, %v2285
        %v2287 = vlaneseq
        %v2288 = vshrl.u32 %v2287, 7
        %v2289 = vsub.s32 %v925, %v2288
        %v2290 = vrot.slane %v2169, %v2289
        %v2291 = vlaneseq
        %v2292 = vshrl.u32 %v2291, 7
        %v2293 = vsub.s32 %v925, %v2292
        %v2294 = vrot.slane %v2172, %v2293
        %v2295 = vlaneseq
        %v2296 = vshrl.u32 %v2295, 7
        %v2297 = vsub.s32 %v925, %v2296
        %v2298 = vrot.slane %v2175, %v2297
        %v2299 = vlaneseq
        %v2300 = vshrl.u32 %v2299, 7
        %v2301 = vsub.s32 %v925, %v2300
        %v2302 = vrot.slane %v2178, %v2301
        %v2303 = vlaneseq
        %v2304 = vshrl.u32 %v2303, 7
        %v2305 = vsub.s32 %v925, %v2304
        %v2306 = vrot.slane %v2181, %v2305
        %v2307 = vlaneseq
        %v2308 = vshrl.u32 %v2307, 7
        %v2309 = vsub.s32 %v925, %v2308
        %v2310 = vrot.slane %v2184, %v2309
        %v2311 = vlaneseq
        %v2312 = vshrl.u32 %v2311, 7
        %v2313 = vsub.s32 %v925, %v2312
        %v2314 = vrot.slane %v2187, %v2313
        %v2315 = vlaneseq
        %v2316 = vshrl.u32 %v2315, 7
        %v2317 = vsub.s32 %v925, %v2316
        %v2318 = vrot.slane %v2190, %v2317
        %v2319 = vsel %vm1054, %v2198, %v2194
        %v2320 = vsel %vm1056, %v2202, %v2319
        %v2321 = vsel %vm1058, %v2206, %v2320
        %v2322 = vsel %vm1060, %v2210, %v2321
        %v2323 = vsel %vm1062, %v2214, %v2322
        %v2324 = vsel %vm1064, %v2218, %v2323
        %v2325 = vsel %vm1066, %v2222, %v2324
        %v2326 = vsel %vm1054, %v2230, %v2226
        %v2327 = vsel %vm1056, %v2234, %v2326
        %v2328 = vsel %vm1058, %v2238, %v2327
        %v2329 = vsel %vm1060, %v2242, %v2328
        %v2330 = vsel %vm1062, %v2246, %v2329
        %v2331 = vsel %vm1064, %v2250, %v2330
        %v2332 = vsel %vm1066, %v2254, %v2331
        %v2333 = vsel %vm1054, %v2262, %v2258
        %v2334 = vsel %vm1056, %v2266, %v2333
        %v2335 = vsel %vm1058, %v2270, %v2334
        %v2336 = vsel %vm1060, %v2274, %v2335
        %v2337 = vsel %vm1062, %v2278, %v2336
        %v2338 = vsel %vm1064, %v2282, %v2337
        %v2339 = vsel %vm1066, %v2286, %v2338
        %v2340 = vsel %vm1054, %v2294, %v2290
        %v2341 = vsel %vm1056, %v2298, %v2340
        %v2342 = vsel %vm1058, %v2302, %v2341
        %v2343 = vsel %vm1060, %v2306, %v2342
        %v2344 = vsel %vm1062, %v2310, %v2343
        %v2345 = vsel %vm1064, %v2314, %v2344
        %v2346 = vsel %vm1066, %v2318, %v2345
        %s2351 = scalar_lea.vmem %s159, 64
        %2352 = vst.msk [vmem:[%s2351] sm:$0xff] %vm1093, %v2325
        %2353 = vst.msk [vmem:[%s2351 + $0x8] sm:$0xff] %vm1093, %v2332
        %2354 = vst.msk [vmem:[%s2351 + $0x10] sm:$0xff] %vm1093, %v2339
        %2355 = vst.msk [vmem:[%s2351 + $0x18] sm:$0xff] %vm1093, %v2346
        %2356 = vset.pattern.permute.xlu0 1
        %2357 = vperm.xlu0 %2356, %v1647
        %v2358 = vpop.permute.xlu0 %2357
        %2359 = vset.pattern.permute.xlu0 1
        %2360 = vperm.xlu0 %2359, %v1648
        %v2361 = vpop.permute.xlu0 %2360
        %2362 = vset.pattern.permute.xlu0 1
        %2363 = vperm.xlu0 %2362, %v1649
        %v2364 = vpop.permute.xlu0 %2363
        %2365 = vset.pattern.permute.xlu0 1
        %2366 = vperm.xlu0 %2365, %v1650
        %v2367 = vpop.permute.xlu0 %2366
        %2368 = vset.pattern.permute.xlu0 1
        %2369 = vperm.xlu0 %2368, %v1651
        %v2370 = vpop.permute.xlu0 %2369
        %2371 = vset.pattern.permute.xlu0 1
        %2372 = vperm.xlu0 %2371, %v1652
        %v2373 = vpop.permute.xlu0 %2372
        %2374 = vset.pattern.permute.xlu0 1
        %2375 = vperm.xlu0 %2374, %v1653
        %v2376 = vpop.permute.xlu0 %2375
        %2377 = vset.pattern.permute.xlu0 1
        %2378 = vperm.xlu0 %2377, %v1654
        %v2379 = vpop.permute.xlu0 %2378
        %2380 = vset.pattern.permute.xlu0 1
        %2381 = vperm.xlu0 %2380, %v1783
        %v2382 = vpop.permute.xlu0 %2381
        %2383 = vset.pattern.permute.xlu0 1
        %2384 = vperm.xlu0 %2383, %v1784
        %v2385 = vpop.permute.xlu0 %2384
        %2386 = vset.pattern.permute.xlu0 1
        %2387 = vperm.xlu0 %2386, %v1785
        %v2388 = vpop.permute.xlu0 %2387
        %2389 = vset.pattern.permute.xlu0 1
        %2390 = vperm.xlu0 %2389, %v1786
        %v2391 = vpop.permute.xlu0 %2390
        %2392 = vset.pattern.permute.xlu0 1
        %2393 = vperm.xlu0 %2392, %v1787
        %v2394 = vpop.permute.xlu0 %2393
        %2395 = vset.pattern.permute.xlu0 1
        %2396 = vperm.xlu0 %2395, %v1788
        %v2397 = vpop.permute.xlu0 %2396
        %2398 = vset.pattern.permute.xlu0 1
        %2399 = vperm.xlu0 %2398, %v1789
        %v2400 = vpop.permute.xlu0 %2399
        %2401 = vset.pattern.permute.xlu0 1
        %2402 = vperm.xlu0 %2401, %v1790
        %v2403 = vpop.permute.xlu0 %2402
        %2404 = vset.pattern.permute.xlu0 1
        %2405 = vperm.xlu0 %2404, %v1919
        %v2406 = vpop.permute.xlu0 %2405
        %2407 = vset.pattern.permute.xlu0 1
        %2408 = vperm.xlu0 %2407, %v1920
        %v2409 = vpop.permute.xlu0 %2408
        %2410 = vset.pattern.permute.xlu0 1
        %2411 = vperm.xlu0 %2410, %v1921
        %v2412 = vpop.permute.xlu0 %2411
        %2413 = vset.pattern.permute.xlu0 1
        %2414 = vperm.xlu0 %2413, %v1922
        %v2415 = vpop.permute.xlu0 %2414
        %2416 = vset.pattern.permute.xlu0 1
        %2417 = vperm.xlu0 %2416, %v1923
        %v2418 = vpop.permute.xlu0 %2417
        %2419 = vset.pattern.permute.xlu0 1
        %2420 = vperm.xlu0 %2419, %v1924
        %v2421 = vpop.permute.xlu0 %2420
        %2422 = vset.pattern.permute.xlu0 1
        %2423 = vperm.xlu0 %2422, %v1925
        %v2424 = vpop.permute.xlu0 %2423
        %2425 = vset.pattern.permute.xlu0 1
        %2426 = vperm.xlu0 %2425, %v1926
        %v2427 = vpop.permute.xlu0 %2426
        %2428 = vset.pattern.permute.xlu0 1
        %2429 = vperm.xlu0 %2428, %v2055
        %v2430 = vpop.permute.xlu0 %2429
        %2431 = vset.pattern.permute.xlu0 1
        %2432 = vperm.xlu0 %2431, %v2056
        %v2433 = vpop.permute.xlu0 %2432
        %2434 = vset.pattern.permute.xlu0 1
        %2435 = vperm.xlu0 %2434, %v2057
        %v2436 = vpop.permute.xlu0 %2435
        %2437 = vset.pattern.permute.xlu0 1
        %2438 = vperm.xlu0 %2437, %v2058
        %v2439 = vpop.permute.xlu0 %2438
        %2440 = vset.pattern.permute.xlu0 1
        %2441 = vperm.xlu0 %2440, %v2059
        %v2442 = vpop.permute.xlu0 %2441
        %2443 = vset.pattern.permute.xlu0 1
        %2444 = vperm.xlu0 %2443, %v2060
        %v2445 = vpop.permute.xlu0 %2444
        %2446 = vset.pattern.permute.xlu0 1
        %2447 = vperm.xlu0 %2446, %v2061
        %v2448 = vpop.permute.xlu0 %2447
        %2449 = vset.pattern.permute.xlu0 1
        %2450 = vperm.xlu0 %2449, %v2062
        %v2451 = vpop.permute.xlu0 %2450
        %v2452 = vlaneseq
        %v2453 = vshrl.u32 %v2452, 7
        %v2454 = vsub.s32 %v925, %v2453
        %v2455 = vrot.slane %v2358, %v2454
        %v2456 = vlaneseq
        %v2457 = vshrl.u32 %v2456, 7
        %v2458 = vsub.s32 %v925, %v2457
        %v2459 = vrot.slane %v2361, %v2458
        %v2460 = vlaneseq
        %v2461 = vshrl.u32 %v2460, 7
        %v2462 = vsub.s32 %v925, %v2461
        %v2463 = vrot.slane %v2364, %v2462
        %v2464 = vlaneseq
        %v2465 = vshrl.u32 %v2464, 7
        %v2466 = vsub.s32 %v925, %v2465
        %v2467 = vrot.slane %v2367, %v2466
        %v2468 = vlaneseq
        %v2469 = vshrl.u32 %v2468, 7
        %v2470 = vsub.s32 %v925, %v2469
        %v2471 = vrot.slane %v2370, %v2470
        %v2472 = vlaneseq
        %v2473 = vshrl.u32 %v2472, 7
        %v2474 = vsub.s32 %v925, %v2473
        %v2475 = vrot.slane %v2373, %v2474
        %v2476 = vlaneseq
        %v2477 = vshrl.u32 %v2476, 7
        %v2478 = vsub.s32 %v925, %v2477
        %v2479 = vrot.slane %v2376, %v2478
        %v2480 = vlaneseq
        %v2481 = vshrl.u32 %v2480, 7
        %v2482 = vsub.s32 %v925, %v2481
        %v2483 = vrot.slane %v2379, %v2482
        %v2484 = vlaneseq
        %v2485 = vshrl.u32 %v2484, 7
        %v2486 = vsub.s32 %v925, %v2485
        %v2487 = vrot.slane %v2382, %v2486
        %v2488 = vlaneseq
        %v2489 = vshrl.u32 %v2488, 7
        %v2490 = vsub.s32 %v925, %v2489
        %v2491 = vrot.slane %v2385, %v2490
        %v2492 = vlaneseq
        %v2493 = vshrl.u32 %v2492, 7
        %v2494 = vsub.s32 %v925, %v2493
        %v2495 = vrot.slane %v2388, %v2494
        %v2496 = vlaneseq
        %v2497 = vshrl.u32 %v2496, 7
        %v2498 = vsub.s32 %v925, %v2497
        %v2499 = vrot.slane %v2391, %v2498
        %v2500 = vlaneseq
        %v2501 = vshrl.u32 %v2500, 7
        %v2502 = vsub.s32 %v925, %v2501
        %v2503 = vrot.slane %v2394, %v2502
        %v2504 = vlaneseq
        %v2505 = vshrl.u32 %v2504, 7
        %v2506 = vsub.s32 %v925, %v2505
        %v2507 = vrot.slane %v2397, %v2506
        %v2508 = vlaneseq
        %v2509 = vshrl.u32 %v2508, 7
        %v2510 = vsub.s32 %v925, %v2509
        %v2511 = vrot.slane %v2400, %v2510
        %v2512 = vlaneseq
        %v2513 = vshrl.u32 %v2512, 7
        %v2514 = vsub.s32 %v925, %v2513
        %v2515 = vrot.slane %v2403, %v2514
        %v2516 = vlaneseq
        %v2517 = vshrl.u32 %v2516, 7
        %v2518 = vsub.s32 %v925, %v2517
        %v2519 = vrot.slane %v2406, %v2518
        %v2520 = vlaneseq
        %v2521 = vshrl.u32 %v2520, 7
        %v2522 = vsub.s32 %v925, %v2521
        %v2523 = vrot.slane %v2409, %v2522
        %v2524 = vlaneseq
        %v2525 = vshrl.u32 %v2524, 7
        %v2526 = vsub.s32 %v925, %v2525
        %v2527 = vrot.slane %v2412, %v2526
        %v2528 = vlaneseq
        %v2529 = vshrl.u32 %v2528, 7
        %v2530 = vsub.s32 %v925, %v2529
        %v2531 = vrot.slane %v2415, %v2530
        %v2532 = vlaneseq
        %v2533 = vshrl.u32 %v2532, 7
        %v2534 = vsub.s32 %v925, %v2533
        %v2535 = vrot.slane %v2418, %v2534
        %v2536 = vlaneseq
        %v2537 = vshrl.u32 %v2536, 7
        %v2538 = vsub.s32 %v925, %v2537
        %v2539 = vrot.slane %v2421, %v2538
        %v2540 = vlaneseq
        %v2541 = vshrl.u32 %v2540, 7
        %v2542 = vsub.s32 %v925, %v2541
        %v2543 = vrot.slane %v2424, %v2542
        %v2544 = vlaneseq
        %v2545 = vshrl.u32 %v2544, 7
        %v2546 = vsub.s32 %v925, %v2545
        %v2547 = vrot.slane %v2427, %v2546
        %v2548 = vlaneseq
        %v2549 = vshrl.u32 %v2548, 7
        %v2550 = vsub.s32 %v925, %v2549
        %v2551 = vrot.slane %v2430, %v2550
        %v2552 = vlaneseq
        %v2553 = vshrl.u32 %v2552, 7
        %v2554 = vsub.s32 %v925, %v2553
        %v2555 = vrot.slane %v2433, %v2554
        %v2556 = vlaneseq
        %v2557 = vshrl.u32 %v2556, 7
        %v2558 = vsub.s32 %v925, %v2557
        %v2559 = vrot.slane %v2436, %v2558
        %v2560 = vlaneseq
        %v2561 = vshrl.u32 %v2560, 7
        %v2562 = vsub.s32 %v925, %v2561
        %v2563 = vrot.slane %v2439, %v2562
        %v2564 = vlaneseq
        %v2565 = vshrl.u32 %v2564, 7
        %v2566 = vsub.s32 %v925, %v2565
        %v2567 = vrot.slane %v2442, %v2566
        %v2568 = vlaneseq
        %v2569 = vshrl.u32 %v2568, 7
        %v2570 = vsub.s32 %v925, %v2569
        %v2571 = vrot.slane %v2445, %v2570
        %v2572 = vlaneseq
        %v2573 = vshrl.u32 %v2572, 7
        %v2574 = vsub.s32 %v925, %v2573
        %v2575 = vrot.slane %v2448, %v2574
        %v2576 = vlaneseq
        %v2577 = vshrl.u32 %v2576, 7
        %v2578 = vsub.s32 %v925, %v2577
        %v2579 = vrot.slane %v2451, %v2578
        %v2580 = vsel %vm1054, %v2459, %v2455
        %v2581 = vsel %vm1056, %v2463, %v2580
        %v2582 = vsel %vm1058, %v2467, %v2581
        %v2583 = vsel %vm1060, %v2471, %v2582
        %v2584 = vsel %vm1062, %v2475, %v2583
        %v2585 = vsel %vm1064, %v2479, %v2584
        %v2586 = vsel %vm1066, %v2483, %v2585
        %v2587 = vsel %vm1054, %v2491, %v2487
        %v2588 = vsel %vm1056, %v2495, %v2587
        %v2589 = vsel %vm1058, %v2499, %v2588
        %v2590 = vsel %vm1060, %v2503, %v2589
        %v2591 = vsel %vm1062, %v2507, %v2590
        %v2592 = vsel %vm1064, %v2511, %v2591
        %v2593 = vsel %vm1066, %v2515, %v2592
        %v2594 = vsel %vm1054, %v2523, %v2519
        %v2595 = vsel %vm1056, %v2527, %v2594
        %v2596 = vsel %vm1058, %v2531, %v2595
        %v2597 = vsel %vm1060, %v2535, %v2596
        %v2598 = vsel %vm1062, %v2539, %v2597
        %v2599 = vsel %vm1064, %v2543, %v2598
        %v2600 = vsel %vm1066, %v2547, %v2599
        %v2601 = vsel %vm1054, %v2555, %v2551
        %v2602 = vsel %vm1056, %v2559, %v2601
        %v2603 = vsel %vm1058, %v2563, %v2602
        %v2604 = vsel %vm1060, %v2567, %v2603
        %v2605 = vsel %vm1062, %v2571, %v2604
        %v2606 = vsel %vm1064, %v2575, %v2605
        %v2607 = vsel %vm1066, %v2579, %v2606
        %s2612 = scalar_lea.vmem %s159, 96
        %2613 = vst.msk [vmem:[%s2612] sm:$0xff] %vm1093, %v2586
        %2614 = vst.msk [vmem:[%s2612 + $0x8] sm:$0xff] %vm1093, %v2593
        %2615 = vst.msk [vmem:[%s2612 + $0x10] sm:$0xff] %vm1093, %v2600
        %2616 = vst.msk [vmem:[%s2612 + $0x18] sm:$0xff] %vm1093, %v2607
        %p2617 = scmp.lt.s32.totalorder %s19, 1
        %s2618 = scalar_select %p2617, %s19, 1
        %p2619 = scmp.lt.s32.totalorder %s20, 0
        %s2620 = scalar_select %p2619, %s20, 0
        %s2621 = smul.addr %s2618, 16
        %s2622 = sadd.s32 %s2620, %s2621
        %s2623 = smul.addr %s2622, 8
        %s2624 = scalar_lea.vmem %s1, %s2623
        // Predicated region
        $region29: #{tpu_custom_call.1} parent=23 // pred_check
          %p2625 = pneg %p75
        $region30: #{tpu_custom_call.1} parent=23 // pred_check_branch
          %2627 = sbr.rel (%p2625) target = $region32
        $region31: #{tpu_custom_call.1} parent=23 // pred_region
          _
        $region32: #{tpu_custom_call.1} parent=23 // pred_fallthru
          _
      $region24: #{tpu_custom_call.1} parent=5 // pred_fallthru
        _
      %p2628 = scmp.le.s32.totalorder 2, %s10
      // Predicated region
      $region33: #{tpu_custom_call.1} parent=5 // pred_check
        %p2629 = pneg %p2628
      $region34: #{tpu_custom_call.1} parent=5 // pred_check_branch
        %2631 = sbr.rel (%p2629) target = $region36
      $region35: #{tpu_custom_call.1} parent=5 // pred_region
        %s2632 = ssub.s32 %s10, 2
        // Predicated region
        $region37: #{tpu_custom_call.1} parent=35 // pred_check
          %p2633 = pneg %p81
        $region38: #{tpu_custom_call.1} parent=35 // pred_check_branch
          %2635 = sbr.rel (%p2633) target = $region40
        $region39: #{tpu_custom_call.1} parent=35 // pred_region
          %p2636 = scmp.lt.s32.totalorder %s21, 1
          %s2637 = scalar_select %p2636, %s21, 1
          %p2638 = scmp.lt.s32.totalorder %s22, 0
          %s2639 = scalar_select %p2638, %s22, 0
          %s2640 = smul.addr %s2637, 16
          %s2641 = sadd.s32 %s2639, %s2640
          %s2642 = smul.addr %s2641, 8
          %s2643 = scalar_lea.vmem %s1, %s2642
        $region40: #{tpu_custom_call.1} parent=35 // pred_fallthru
          _
      $region36: #{tpu_custom_call.1} parent=5 // pred_fallthru
        _
    $region6: #{tpu_custom_call.1} parent=1 // loop_footer
      %s14 = sadd.s32 1, %s10
    $region7: #{tpu_custom_call.1} parent=1 // loop_footer_branch
      %9 = sbr.rel target = $region3
    $region8: #{tpu_custom_call.1} parent=1 // loop_exit
      _
    %2644 = vsyncpa [#allocation3], 1
    %s2645 = scalar_lea.sflag [#allocation3], 1
    %2646 = vsyncpa %s2645, 1

</llo_original>
